<compile_context>
chip_gen: v5e
topology: v5e:2x2
jax: 0.10.0
libtpu: 0.0.40
codegen_flags: <defaults>
</compile_context>

<pallas_src>
import numpy as np
import jax
import jax.numpy as jnp
from jax.experimental import pallas as pl
from jax.experimental.pallas import tpu as pltpu

# ---- constants matching the torch module's mel_args / MFCC setup ----
SAMPLE_RATE = 16000
N_FFT = 512
HOP = 256                      # == n_fft // 2 -> frames are two adjacent chunks
N_MELS = 80
N_FREQ = N_FFT // 2 + 1        # 257 onesided rFFT bins
LOG_OFFSET = 1e-6              # torchaudio MFCC log_mels offset


# ------------------------- deterministic parameter builders -------------------------
def _hann_window(n_fft):
    # torch.hann_window(periodic=True)
    n = np.arange(n_fft)
    return 0.5 - 0.5 * np.cos(2.0 * np.pi * n / n_fft)


def _mel_fbanks(n_freqs, f_min, f_max, n_mels, sr):
    # torchaudio.functional.melscale_fbanks, mel_scale='htk', norm=None
    def hz_to_mel(f):
        return 2595.0 * np.log10(1.0 + f / 700.0)

    def mel_to_hz(m):
        return 700.0 * (10.0 ** (m / 2595.0) - 1.0)

    all_freqs = np.linspace(0.0, sr / 2.0, n_freqs)
    m_pts = np.linspace(hz_to_mel(f_min), hz_to_mel(f_max), n_mels + 2)
    f_pts = mel_to_hz(m_pts)
    f_diff = f_pts[1:] - f_pts[:-1]
    slopes = f_pts[None, :] - all_freqs[:, None]             # (n_freqs, n_mels+2)
    down = -slopes[:, :-2] / f_diff[:-1]
    up = slopes[:, 2:] / f_diff[1:]
    return np.maximum(0.0, np.minimum(down, up))             # (n_freqs, n_mels)


def _dct_matrix(n_mfcc, n_mels):
    # torchaudio.functional.create_dct(n_mfcc, n_mels, norm=None), transposed
    n = np.arange(n_mels)[None, :]
    k = np.arange(n_mfcc)[:, None]
    dct = np.cos(np.pi / n_mels * (n + 0.5) * k) * 2.0
    return np.ascontiguousarray(dct.T)                       # (n_mels, n_mfcc)


def _stacked_windowed_dft(n_fft):
    """Windowed real-DFT as one lane-aligned (n_fft, n_fft) RHS, split in row halves.

    Columns 0..N/2      : cos(2*pi*n*k/N),  k = 0..N/2   (257 columns)
    Columns N/2+1..N-1  : -sin(2*pi*n*k/N), k = 1..N/2-1 (255 columns)
    sin(k=0) and sin(k=N/2) are identically zero, so 257+255 = 512 exactly.
    The Hann window is folded into the rows.  Returned as (W_lo, W_hi) =
    rows [0:N/2], [N/2:N] so that frame_t @ W == chunk_t @ W_lo + chunk_{t+1} @ W_hi.
    """
    n = np.arange(n_fft)[:, None].astype(np.float64)
    k_cos = np.arange(n_fft // 2 + 1)[None, :]
    k_sin = np.arange(1, n_fft // 2)[None, :]
    cos_m = np.cos(2.0 * np.pi * n * k_cos / n_fft)
    sin_m = -np.sin(2.0 * np.pi * n * k_sin / n_fft)
    w = np.concatenate([cos_m, sin_m], axis=1) * _hann_window(n_fft)[:, None]
    half = n_fft // 2
    return w[:half], w[half:]                                 # each (256, 512)


def _stacked_mel_matrix(n_fft, n_mels, sr):
    """Mel filterbank mapped onto the stacked [cos | sin] columns so that
    (re_im**2) @ mel2 == (re**2 + im**2) @ fb exactly (Im_0 = Im_{N/2} = 0)."""
    fb = _mel_fbanks(n_fft // 2 + 1, 0.0, sr / 2.0, n_mels, sr)   # (257, n_mels)
    return np.concatenate([fb, fb[1:n_fft // 2]], axis=0)         # (512, n_mels)


# ------------------------------------ kernel ------------------------------------
def _make_kernel(bblk, T, n_mfcc, out_lanes, compute_dtype):
    R = bblk * T                 # fused rows per grid step (batch-major)
    pad = out_lanes - 3 * n_mfcc

    def kernel(chunks_ref, wlo_ref, whi_ref, mel2_ref, dct_ref, out_ref):
        # Rebuild overlapping frames from non-overlapping hop chunks:
        # frame_t = [chunk_t | chunk_{t+1}]  =>  frame_t @ W = chunk_t@W_lo + chunk_{t+1}@W_hi
        lo = chunks_ref[:, :T, :].reshape(R, HOP).astype(compute_dtype)   # (R, 256)
        hi = chunks_ref[:, 1:, :].reshape(R, HOP).astype(compute_dtype)   # (R, 256)

        re_im = (jnp.dot(lo, wlo_ref[...], preferred_element_type=jnp.float32)
                 + jnp.dot(hi, whi_ref[...], preferred_element_type=jnp.float32))  # (R, 512) f32

        # power spectrum (Re^2 + Im^2) is folded into the stacked mel matmul
        sq = (re_im * re_im).astype(compute_dtype)
        mel = jnp.dot(sq, mel2_ref[...], preferred_element_type=jnp.float32)        # (R, 80)
        logmel = jnp.log(mel + LOG_OFFSET)

        mfcc = jnp.dot(logmel, dct_ref[...], preferred_element_type=jnp.float32)    # (R, n_mfcc)

        # ComputeDeltas(win_length=3, mode='constant'): (x[t+1] - x[t-1]) / 2, zero padded.
        # Rows are batch-major, so masking t==0 / t==T-1 also kills the cyclic-roll
        # wrap and any cross-batch contamination.
        t_idx = jax.lax.broadcasted_iota(jnp.int32, (R, n_mfcc), 0) % T

        def delta(v):
            nxt = jnp.where(t_idx == T - 1, 0.0, pltpu.roll(v, R - 1, axis=0))  # v[t+1]
            prv = jnp.where(t_idx == 0, 0.0, pltpu.roll(v, 1, axis=0))          # v[t-1]
            return (nxt - prv) * 0.5

        d = delta(mfcc)
        dd = delta(d)

        parts = [mfcc, d, dd]
        if pad > 0:
            parts.append(jnp.zeros((R, pad), jnp.float32))
        feat = jnp.concatenate(parts, axis=1)                 # (R, out_lanes), lane-dense
        out_ref[...] = feat.reshape(bblk, T, out_lanes)

    return kernel


# ------------------------------------ wrapper ------------------------------------
def _choose_bblk(B, T, target_rows=1024):
    # Fuse enough batch elements to fill the MXU M-dim while staying well inside
    # the default scoped-VMEM budget (v7x has only 64 MiB physical per core).
    bblk = max(1, target_rows // max(T, 1))
    if B >= 2:
        # keep at least two grid steps so v7x's two TensorCores both get work
        bblk = min(bblk, (B + 1) // 2)
    return max(1, min(bblk, B))


def mfcc_derivatives(wav, n_mfcc, normalise=False, compute_dtype=jnp.bfloat16):
    B, L = wav.shape
    T = (L - N_FFT) // HOP + 1                        # center=False framing
    assert T >= 1, "waveform shorter than one frame"

    # hop-sized, non-overlapping chunks -> wav is read (essentially) once.
    chunks = wav[:, : (T + 1) * HOP].reshape(B, T + 1, HOP).astype(jnp.float32)

    bblk = _choose_bblk(B, T)
    nb = pl.cdiv(B, bblk)
    b_pad = nb * bblk
    if b_pad != B:
        chunks = jnp.concatenate(
            [chunks, jnp.zeros((b_pad - B, T + 1, HOP), chunks.dtype)], axis=0)

    w_lo_np, w_hi_np = _stacked_windowed_dft(N_FFT)
    w_lo = jnp.asarray(w_lo_np, dtype=compute_dtype)                       # (256, 512)
    w_hi = jnp.asarray(w_hi_np, dtype=compute_dtype)                       # (256, 512)
    mel2 = jnp.asarray(_stacked_mel_matrix(N_FFT, N_MELS, SAMPLE_RATE),
                       dtype=compute_dtype)                                # (512, 80)
    dct_m = jnp.asarray(_dct_matrix(n_mfcc, N_MELS), dtype=jnp.float32)    # (80, n_mfcc)

    out_lanes = ((3 * n_mfcc + 127) // 128) * 128     # lane-dense (unmasked) stores

    kernel = _make_kernel(bblk, T, n_mfcc, out_lanes, compute_dtype)

    # TODO(synk): extremely long single clips (T of many thousands) would need a
    # time-tiled variant with a 1-frame halo for the deltas; current blocks keep
    # the full T of one batch element resident in VMEM.
    out = pl.pallas_call(
        kernel,
        out_shape=jax.ShapeDtypeStruct((b_pad, T, out_lanes), jnp.float32),
        grid_spec=pltpu.PrefetchScalarGridSpec(
            num_scalar_prefetch=0,
            grid=(nb,),
            in_specs=[
                pl.BlockSpec((bblk, T + 1, HOP), lambda b: (b, 0, 0)),
                pl.BlockSpec((HOP, N_FFT), lambda b: (0, 0)),
                pl.BlockSpec((HOP, N_FFT), lambda b: (0, 0)),
                pl.BlockSpec((N_FFT, N_MELS), lambda b: (0, 0)),
                pl.BlockSpec((N_MELS, n_mfcc), lambda b: (0, 0)),
            ],
            out_specs=pl.BlockSpec((bblk, T, out_lanes), lambda b: (b, 0, 0)),
        ),
        compiler_params=pltpu.CompilerParams(dimension_semantics=("parallel",)),
    )(chunks, w_lo, w_hi, mel2, dct_m)

    feature = jnp.transpose(out[:B, :, : 3 * n_mfcc], (0, 2, 1))   # (B, 3*n_mfcc, T)

    if normalise:
        # cheap per-batch normalization branch (glue, kept in plain JAX)
        o_th = jnp.exp(feature[:, 0, :] / 500.0) - 1.0             # (B, T)
        am = jnp.max(o_th, axis=1)                                 # (B,)
        o_th = o_th / (am + 0.01)[:, None]
        feature = jnp.concatenate(
            [o_th[:, None, :], feature[:, 1:, :] / 150.0], axis=1)
    return feature


if __name__ == "__main__":
    key = jax.random.PRNGKey(0)
    B = 2
    n_mfcc = 13
    T = 8
    L = N_FFT + HOP * (T - 1)                          # 2304 samples -> 8 frames
    wav = jax.random.normal(key, (B, L), dtype=jnp.float32)

    feat = mfcc_derivatives(wav, n_mfcc=n_mfcc, normalise=False)
    feat = jax.block_until_ready(feat)
    assert feat.shape == (B, 3 * n_mfcc, T), feat.shape
    assert bool(jnp.all(jnp.isfinite(feat)))
    print("KERNEL_OK")
</pallas_src>

<mosaic_0001>
module attributes {stable_mosaic.version = 11 : i64} {
  func.func @kernel(%arg0: i32, %arg1: memref<1x9x256xf32, #tpu.memory_space<vmem>>, %arg2: memref<256x512xbf16, #tpu.memory_space<vmem>>, %arg3: memref<256x512xbf16, #tpu.memory_space<vmem>>, %arg4: memref<512x80xbf16, #tpu.memory_space<vmem>>, %arg5: memref<80x13xf32, #tpu.memory_space<vmem>>, %arg6: memref<1x8x128xf32, #tpu.memory_space<vmem>>) attributes {dimension_semantics = [#tpu.dimension_semantics<parallel>], iteration_bounds = array<i64: 2>, scalar_prefetch = 0 : i64, scratch_operands = 0 : i64, tpu.core_type = #tpu.core_type<tc>, window_params = [{transform_indices = @transform_0, window_bounds = array<i64: 1, 9, 256>}, {pipeline_mode = #tpu.pipeline_mode<synchronous>, transform_indices = @transform_1, window_bounds = array<i64: 256, 512>}, {pipeline_mode = #tpu.pipeline_mode<synchronous>, transform_indices = @transform_2, window_bounds = array<i64: 256, 512>}, {pipeline_mode = #tpu.pipeline_mode<synchronous>, transform_indices = @transform_3, window_bounds = array<i64: 512, 80>}, {pipeline_mode = #tpu.pipeline_mode<synchronous>, transform_indices = @transform_4, window_bounds = array<i64: 80, 13>}, {transform_indices = @transform_5, window_bounds = array<i64: 1, 8, 128>}]} {
    %c0 = arith.constant 0 : index
    %c0_0 = arith.constant 0 : index
    %c0_1 = arith.constant 0 : index
    %0 = vector.load %arg1[%c0, %c0_0, %c0_1] : memref<1x9x256xf32, #tpu.memory_space<vmem>>, vector<1x8x256xf32>
    %1 = vector.shape_cast %0 : vector<1x8x256xf32> to vector<8x256xf32>
    %2 = arith.truncf %1 : vector<8x256xf32> to vector<8x256xbf16>
    %c0_2 = arith.constant 0 : index
    %c1 = arith.constant 1 : index
    %c0_3 = arith.constant 0 : index
    %3 = vector.load %arg1[%c0_2, %c1, %c0_3] : memref<1x9x256xf32, #tpu.memory_space<vmem>>, vector<1x8x256xf32>
    %4 = vector.shape_cast %3 : vector<1x8x256xf32> to vector<8x256xf32>
    %5 = arith.truncf %4 : vector<8x256xf32> to vector<8x256xbf16>
    %c0_4 = arith.constant 0 : index
    %c0_5 = arith.constant 0 : index
    %6 = vector.load %arg2[%c0_4, %c0_5] : memref<256x512xbf16, #tpu.memory_space<vmem>>, vector<256x512xbf16>
    %cst = arith.constant dense<0.000000e+00> : vector<8x512xf32>
    %7 = tpu.matmul %2, %6, %cst {dimension_numbers = #tpu.dot_dimension_numbers<[1], [0], [0], [1], [0, 0, 1, 1], [], []>} : vector<8x256xbf16>, vector<256x512xbf16>, vector<8x512xf32> -> vector<8x512xf32>
    %c0_6 = arith.constant 0 : index
    %c0_7 = arith.constant 0 : index
    %8 = vector.load %arg3[%c0_6, %c0_7] : memref<256x512xbf16, #tpu.memory_space<vmem>>, vector<256x512xbf16>
    %cst_8 = arith.constant dense<0.000000e+00> : vector<8x512xf32>
    %9 = tpu.matmul %5, %8, %cst_8 {dimension_numbers = #tpu.dot_dimension_numbers<[1], [0], [0], [1], [0, 0, 1, 1], [], []>} : vector<8x256xbf16>, vector<256x512xbf16>, vector<8x512xf32> -> vector<8x512xf32>
    %10 = arith.addf %7, %9 : vector<8x512xf32>
    %11 = arith.mulf %10, %10 : vector<8x512xf32>
    %12 = arith.truncf %11 : vector<8x512xf32> to vector<8x512xbf16>
    %c0_9 = arith.constant 0 : index
    %c0_10 = arith.constant 0 : index
    %13 = vector.load %arg4[%c0_9, %c0_10] : memref<512x80xbf16, #tpu.memory_space<vmem>>, vector<512x80xbf16>
    %cst_11 = arith.constant dense<0.000000e+00> : vector<8x80xf32>
    %14 = tpu.matmul %12, %13, %cst_11 {dimension_numbers = #tpu.dot_dimension_numbers<[1], [0], [0], [1], [0, 0, 1, 1], [], []>} : vector<8x512xbf16>, vector<512x80xbf16>, vector<8x80xf32> -> vector<8x80xf32>
    %cst_12 = arith.constant 9.99999997E-7 : f32
    %15 = vector.broadcast %cst_12 : f32 to vector<8x80xf32>
    %16 = arith.addf %14, %15 : vector<8x80xf32>
    %17 = math.log %16 : vector<8x80xf32>
    %c0_13 = arith.constant 0 : index
    %c0_14 = arith.constant 0 : index
    %18 = vector.load %arg5[%c0_13, %c0_14] : memref<80x13xf32, #tpu.memory_space<vmem>>, vector<80x13xf32>
    %cst_15 = arith.constant dense<0.000000e+00> : vector<8x13xf32>
    %19 = tpu.matmul %17, %18, %cst_15 {dimension_numbers = #tpu.dot_dimension_numbers<[1], [0], [0], [1], [0, 0, 1, 1], [], []>} : vector<8x80xf32>, vector<80x13xf32>, vector<8x13xf32> -> vector<8x13xf32>
    %20 = tpu.iota {dimensions = array<i32: 0>} : vector<8x13xi32>
    %c8_i32 = arith.constant 8 : i32
    %c0_i32 = arith.constant 0 : i32
    %21 = arith.cmpi eq, %c8_i32, %c0_i32 : i32
    %c1_i32 = arith.constant 1 : i32
    %22 = arith.select %21, %c1_i32, %c8_i32 : i32
    %23 = vector.broadcast %22 : i32 to vector<8x13xi32>
    %24 = arith.remsi %20, %23 : vector<8x13xi32>
    %c0_i32_16 = arith.constant 0 : i32
    %25 = vector.broadcast %c0_i32_16 : i32 to vector<8x13xi32>
    %26 = arith.cmpi ne, %24, %25 : vector<8x13xi32>
    %c0_i32_17 = arith.constant 0 : i32
    %27 = vector.broadcast %c0_i32_17 : i32 to vector<8x13xi32>
    %28 = arith.cmpi slt, %24, %27 : vector<8x13xi32>
    %c0_i32_18 = arith.constant 0 : i32
    %29 = arith.cmpi slt, %22, %c0_i32_18 : i32
    %30 = vector.broadcast %29 : i1 to vector<8x13xi1>
    %31 = vector.broadcast %30 : vector<8x13xi1> to vector<8x13xi1>
    %32 = arith.xori %28, %31 : vector<8x13xi1>
    %33 = arith.andi %32, %26 : vector<8x13xi1>
    %34 = vector.broadcast %22 : i32 to vector<8x13xi32>
    %35 = arith.addi %24, %34 : vector<8x13xi32>
    %36 = arith.select %33, %35, %24 : vector<8x13xi1>, vector<8x13xi32>
    %c7_i32 = arith.constant 7 : i32
    %37 = vector.broadcast %c7_i32 : i32 to vector<8x13xi32>
    %38 = arith.cmpi eq, %36, %37 : vector<8x13xi32>
    %c7_i32_19 = arith.constant 7 : i32
    %39 = tpu.dynamic_rotate %19 by %c7_i32_19 dim 0 : vector<8x13xf32>, i32 -> vector<8x13xf32>
    %cst_20 = arith.constant 0.000000e+00 : f32
    %40 = vector.broadcast %cst_20 : f32 to vector<8x13xf32>
    %41 = arith.select %38, %40, %39 : vector<8x13xi1>, vector<8x13xf32>
    %c0_i32_21 = arith.constant 0 : i32
    %42 = vector.broadcast %c0_i32_21 : i32 to vector<8x13xi32>
    %43 = arith.cmpi eq, %36, %42 : vector<8x13xi32>
    %c1_i32_22 = arith.constant 1 : i32
    %44 = tpu.dynamic_rotate %19 by %c1_i32_22 dim 0 : vector<8x13xf32>, i32 -> vector<8x13xf32>
    %cst_23 = arith.constant 0.000000e+00 : f32
    %45 = vector.broadcast %cst_23 : f32 to vector<8x13xf32>
    %46 = arith.select %43, %45, %44 : vector<8x13xi1>, vector<8x13xf32>
    %47 = arith.subf %41, %46 : vector<8x13xf32>
    %cst_24 = arith.constant 5.000000e-01 : f32
    %48 = vector.broadcast %cst_24 : f32 to vector<8x13xf32>
    %49 = arith.mulf %47, %48 : vector<8x13xf32>
    %c7_i32_25 = arith.constant 7 : i32
    %50 = vector.broadcast %c7_i32_25 : i32 to vector<8x13xi32>
    %51 = arith.cmpi eq, %36, %50 : vector<8x13xi32>
    %c7_i32_26 = arith.constant 7 : i32
    %52 = tpu.dynamic_rotate %49 by %c7_i32_26 dim 0 : vector<8x13xf32>, i32 -> vector<8x13xf32>
    %cst_27 = arith.constant 0.000000e+00 : f32
    %53 = vector.broadcast %cst_27 : f32 to vector<8x13xf32>
    %54 = arith.select %51, %53, %52 : vector<8x13xi1>, vector<8x13xf32>
    %c0_i32_28 = arith.constant 0 : i32
    %55 = vector.broadcast %c0_i32_28 : i32 to vector<8x13xi32>
    %56 = arith.cmpi eq, %36, %55 : vector<8x13xi32>
    %c1_i32_29 = arith.constant 1 : i32
    %57 = tpu.dynamic_rotate %49 by %c1_i32_29 dim 0 : vector<8x13xf32>, i32 -> vector<8x13xf32>
    %cst_30 = arith.constant 0.000000e+00 : f32
    %58 = vector.broadcast %cst_30 : f32 to vector<8x13xf32>
    %59 = arith.select %56, %58, %57 : vector<8x13xi1>, vector<8x13xf32>
    %60 = arith.subf %54, %59 : vector<8x13xf32>
    %cst_31 = arith.constant 5.000000e-01 : f32
    %61 = vector.broadcast %cst_31 : f32 to vector<8x13xf32>
    %62 = arith.mulf %60, %61 : vector<8x13xf32>
    %cst_32 = arith.constant 0.000000e+00 : f32
    %63 = vector.broadcast %cst_32 : f32 to vector<8x89xf32>
    %64 = tpu.concatenate %19, %49, %62, %63 in 1 : vector<8x13xf32>, vector<8x13xf32>, vector<8x13xf32>, vector<8x89xf32> -> vector<8x128xf32>
    %65 = vector.shape_cast %64 : vector<8x128xf32> to vector<1x8x128xf32>
    %c0_33 = arith.constant 0 : index
    %c0_34 = arith.constant 0 : index
    %c0_35 = arith.constant 0 : index
    %66 = vector.load %arg6[%c0_33, %c0_34, %c0_35] : memref<1x8x128xf32, #tpu.memory_space<vmem>>, vector<1x8x128xf32>
    tpu.vector_store %arg6[%c0_33, %c0_34, %c0_35], %65 {strides = array<i32>} : memref<1x8x128xf32, #tpu.memory_space<vmem>>, vector<1x8x128xf32>,
    return
  }
  func.func @transform_0(%arg0: i32) -> (i32, i32, i32) {
    %c0_i32 = arith.constant 0 : i32
    %c0_i32_0 = arith.constant 0 : i32
    %c0_i32_1 = arith.constant 0 : i32
    return %arg0, %c0_i32, %c0_i32_0 : i32, i32, i32
  }
  func.func @transform_1(%arg0: i32) -> (i32, i32) {
    %c0_i32 = arith.constant 0 : i32
    %c0_i32_0 = arith.constant 0 : i32
    %c0_i32_1 = arith.constant 0 : i32
    return %c0_i32, %c0_i32_0 : i32, i32
  }
  func.func @transform_2(%arg0: i32) -> (i32, i32) {
    %c0_i32 = arith.constant 0 : i32
    %c0_i32_0 = arith.constant 0 : i32
    %c0_i32_1 = arith.constant 0 : i32
    return %c0_i32, %c0_i32_0 : i32, i32
  }
  func.func @transform_3(%arg0: i32) -> (i32, i32) {
    %c0_i32 = arith.constant 0 : i32
    %c0_i32_0 = arith.constant 0 : i32
    %c0_i32_1 = arith.constant 0 : i32
    return %c0_i32, %c0_i32_0 : i32, i32
  }
  func.func @transform_4(%arg0: i32) -> (i32, i32) {
    %c0_i32 = arith.constant 0 : i32
    %c0_i32_0 = arith.constant 0 : i32
    %c0_i32_1 = arith.constant 0 : i32
    return %c0_i32, %c0_i32_0 : i32, i32
  }
  func.func @transform_5(%arg0: i32) -> (i32, i32, i32) {
    %c0_i32 = arith.constant 0 : i32
    %c0_i32_0 = arith.constant 0 : i32
    %c0_i32_1 = arith.constant 0 : i32
    return %arg0, %c0_i32, %c0_i32_0 : i32, i32, i32
  }
}

</mosaic_0001>

<llo_original>
// kernel: tpu_custom_call.1
$region0: #{tpu_custom_call.1}
  #allocation0 [shape = 'u32[]', space=smem, size = 0x4, offset = 0x4, fixed_abs, tag = 'smem constant byte address 0x4 - core index']
  #allocation1 [shape = 'u32[72,128]{1,0:T(1,128)}', space=vmem, size = 0x9000, scoped, tag = 'internal scratch']
  %s0 = inlined_call_operand.vmem [shape: f32[2,9,256], index: 0, kind: input, shape index: {}]
  %s1 = inlined_call_operand.hbm [shape: bf16[256,512], index: 1, kind: input, shape index: {}]
  %s2 = inlined_call_operand.hbm [shape: bf16[256,512], index: 2, kind: input, shape index: {}]
  %s3 = inlined_call_operand.vmem [shape: bf16[512,80], index: 3, kind: input, shape index: {}]
  %s4 = inlined_call_operand.vmem [shape: f32[80,13], index: 4, kind: input, shape index: {}]
  %s5 = inlined_call_operand.hbm [shape: f32[2,8,128], index: 5, kind: output, shape index: {}]
  %s6 = sld [smem:[#allocation0]]
  $region61: #{tpu_custom_call.1} parent=0
    _
  %s8 = ssub.s32 1, %s6
  %s9 = scalar_select 0, %s8, %s6
  $region1: #{tpu_custom_call.1} parent=0
    #allocation2 [shape = 'u8[262144]{0}', space=vmem, size = 0x40000, scoped, tag = 'input window, operand 1, single buffered']
    #allocation3 [shape = 's32[2]{0}', space=sflag, size = 0x8, scoped, tag = 'scoped memory for tpu_custom_call.1']
    #allocation4 [shape = 's32[2]{0}', space=sflag, size = 0x8, scoped, tag = 'scoped memory for tpu_custom_call.1']
    #allocation5 [shape = 'u8[262144]{0}', space=vmem, size = 0x40000, scoped, tag = 'input window, operand 2, single buffered']
    #allocation6 [shape = 's32[1]{0}', space=sflag, size = 0x4, scoped, tag = 'scoped memory for tpu_custom_call.1']
    #allocation7 [shape = 'u8[8192]{0}', space=vmem, size = 0x2000, scoped, tag = 'output window, operand 0']
    %10 = vsyncpa [#allocation3], 0
    %11 = vsyncpa [#allocation6], 0
    %12 = vsyncpa [#allocation4], 0
    %s13 = scalar_lea.sflag [#allocation4], 1
    %14 = vsyncpa %s13, 0
    loop: start=0, step=1, limit=4
    $region2: #{tpu_custom_call.1} parent=1 // loop_pre_header
      _
    $region3: #{tpu_custom_call.1} parent=1 // loop_header
      %s16 = sphi 0, %s20
      %p17 = scmp.ge.s32.totalorder %s16, 4
      %s26 = sphi 0, %s28
      %s29 = sphi 0, %s26
      %s30 = sphi 0, %s29
      %s46 = sphi 0, %s30
      %s50 = sphi 0, %s50
      %s52 = sphi 0, %s50
      %s53 = sphi 0, %s52
      %s67 = sphi 0, %s53
      %s71 = sphi 0, %s71
      %s73 = sphi 0, %s71
      %s74 = sphi 0, %s73
      %s88 = sphi 0, %s74
      %s92 = sphi 0, %s92
      %s94 = sphi 0, %s92
      %s95 = sphi 0, %s94
      %s109 = sphi 0, %s95
      %s113 = sphi 0, %s113
      %s115 = sphi 0, %s113
      %s116 = sphi 0, %s115
      %s130 = sphi 0, %s116
      %s136 = sphi 0, %s138
      %s139 = sphi 0, %s136
      %s140 = sphi 0, %s139
      %s156 = sphi 0, %s140
    $region4: #{tpu_custom_call.1} parent=1 // loop_header_branch
      %19 = sbr.rel (%p17) target = $region8
    $region5: #{tpu_custom_call.1} parent=1 // loop_body
      %s21 = ssub.s32 %s16, 1
      %s22 = ssub.s32 %s16, 2
      %s23 = sadd.s32 %s16, 1
      %s24 = ssub.s32 %s16, %s23
      %p25 = scmp.eq.s32.totalorder %s24, 0
      %s27 = sadd.s32 %s26, 1
      %s28 = scalar_select %p25, %s26, %s27
      %p31 = pneg %p25
      %p32 = scmp.eq.s32.totalorder %s16, 1
      %p33 = por %p31, %p32
      %p34 = scmp.ne.s32.totalorder %s26, %s29
      %p35 = scmp.eq.s32.totalorder %s16, 0
      %p36 = por %p34, %p35
      %p37 = scmp.ne.s32.totalorder %s26, %s29
      %p38 = scmp.eq.s32.totalorder %s21, 1
      %p39 = por %p37, %p38
      %p40 = scmp.ne.s32.totalorder %s29, %s30
      %p41 = scmp.eq.s32.totalorder %s21, 0
      %p42 = por %p40, %p41
      %p43 = scmp.ne.s32.totalorder %s29, %s30
      %p44 = scmp.eq.s32.totalorder %s22, 1
      %p45 = por %p43, %p44
      %p47 = scmp.ne.s32.totalorder %s30, %s46
      %p48 = scmp.eq.s32.totalorder %s22, 0
      %p49 = por %p47, %p48
      %s51 = sadd.s32 %s50, 1
      %p54 = scmp.eq.s32.totalorder %s16, 1
      %p55 = scmp.ne.s32.totalorder %s50, %s52
      %p56 = scmp.eq.s32.totalorder %s16, 0
      %p57 = por %p55, %p56
      %p58 = scmp.ne.s32.totalorder %s50, %s52
      %p59 = scmp.eq.s32.totalorder %s21, 1
      %p60 = por %p58, %p59
      %p61 = scmp.ne.s32.totalorder %s52, %s53
      %p62 = scmp.eq.s32.totalorder %s21, 0
      %p63 = por %p61, %p62
      %p64 = scmp.ne.s32.totalorder %s52, %s53
      %p65 = scmp.eq.s32.totalorder %s22, 1
      %p66 = por %p64, %p65
      %p68 = scmp.ne.s32.totalorder %s53, %s67
      %p69 = scmp.eq.s32.totalorder %s22, 0
      %p70 = por %p68, %p69
      %s72 = sadd.s32 %s71, 1
      %p75 = scmp.eq.s32.totalorder %s16, 1
      %p76 = scmp.ne.s32.totalorder %s71, %s73
      %p77 = scmp.eq.s32.totalorder %s16, 0
      %p78 = por %p76, %p77
      %p79 = scmp.ne.s32.totalorder %s71, %s73
      %p80 = scmp.eq.s32.totalorder %s21, 1
      %p81 = por %p79, %p80
      %p82 = scmp.ne.s32.totalorder %s73, %s74
      %p83 = scmp.eq.s32.totalorder %s21, 0
      %p84 = por %p82, %p83
      %p85 = scmp.ne.s32.totalorder %s73, %s74
      %p86 = scmp.eq.s32.totalorder %s22, 1
      %p87 = por %p85, %p86
      %p89 = scmp.ne.s32.totalorder %s74, %s88
      %p90 = scmp.eq.s32.totalorder %s22, 0
      %p91 = por %p89, %p90
      %s93 = sadd.s32 %s92, 1
      %p96 = scmp.eq.s32.totalorder %s16, 1
      %p97 = scmp.ne.s32.totalorder %s92, %s94
      %p98 = scmp.eq.s32.totalorder %s16, 0
      %p99 = por %p97, %p98
      %p100 = scmp.ne.s32.totalorder %s92, %s94
      %p101 = scmp.eq.s32.totalorder %s21, 1
      %p102 = por %p100, %p101
      %p103 = scmp.ne.s32.totalorder %s94, %s95
      %p104 = scmp.eq.s32.totalorder %s21, 0
      %p105 = por %p103, %p104
      %p106 = scmp.ne.s32.totalorder %s94, %s95
      %p107 = scmp.eq.s32.totalorder %s22, 1
      %p108 = por %p106, %p107
      %p110 = scmp.ne.s32.totalorder %s95, %s109
      %p111 = scmp.eq.s32.totalorder %s22, 0
      %p112 = por %p110, %p111
      %s114 = sadd.s32 %s113, 1
      %p117 = scmp.eq.s32.totalorder %s16, 1
      %p118 = scmp.ne.s32.totalorder %s113, %s115
      %p119 = scmp.eq.s32.totalorder %s16, 0
      %p120 = por %p118, %p119
      %p121 = scmp.ne.s32.totalorder %s113, %s115
      %p122 = scmp.eq.s32.totalorder %s21, 1
      %p123 = por %p121, %p122
      %p124 = scmp.ne.s32.totalorder %s115, %s116
      %p125 = scmp.eq.s32.totalorder %s21, 0
      %p126 = por %p124, %p125
      %p127 = scmp.ne.s32.totalorder %s115, %s116
      %p128 = scmp.eq.s32.totalorder %s22, 1
      %p129 = por %p127, %p128
      %p131 = scmp.ne.s32.totalorder %s116, %s130
      %p132 = scmp.eq.s32.totalorder %s22, 0
      %p133 = por %p131, %p132
      %s134 = ssub.s32 %s16, %s23
      %p135 = scmp.eq.s32.totalorder %s134, 0
      %s137 = sadd.s32 %s136, 1
      %s138 = scalar_select %p135, %s136, %s137
      %p141 = pneg %p135
      %p142 = scmp.eq.s32.totalorder %s16, 1
      %p143 = por %p141, %p142
      %p144 = scmp.ne.s32.totalorder %s136, %s139
      %p145 = scmp.eq.s32.totalorder %s16, 0
      %p146 = por %p144, %p145
      %p147 = scmp.ne.s32.totalorder %s136, %s139
      %p148 = scmp.eq.s32.totalorder %s21, 1
      %p149 = por %p147, %p148
      %p150 = scmp.ne.s32.totalorder %s139, %s140
      %p151 = scmp.eq.s32.totalorder %s21, 0
      %p152 = por %p150, %p151
      %p153 = scmp.ne.s32.totalorder %s139, %s140
      %p154 = scmp.eq.s32.totalorder %s22, 1
      %p155 = por %p153, %p154
      %p157 = scmp.ne.s32.totalorder %s140, %s156
      %p158 = scmp.eq.s32.totalorder %s22, 0
      %p159 = por %p157, %p158
      %p160 = scmp.le.s32.totalorder 1, %s16
      %p161 = scmp.lt.s32.totalorder %s16, 3
      %p162 = pnand %p160, %p161
      %p163 = pneg %p162
      // Predicated region
      $region9: #{tpu_custom_call.1} parent=5 // pred_check
        _
      $region10: #{tpu_custom_call.1} parent=5 // pred_check_branch
        %165 = sbr.rel (%p162) target = $region12
      $region11: #{tpu_custom_call.1} parent=5 // pred_region
        %s166 = ssub.s32 %s16, 1
        // Predicated region
        $region13: #{tpu_custom_call.1} parent=11 // pred_check
          %p167 = pneg %p63
        $region14: #{tpu_custom_call.1} parent=11 // pred_check_branch
          %169 = sbr.rel (%p167) target = $region16
        $region15: #{tpu_custom_call.1} parent=11 // pred_region
          %171 = vsyncadd [#allocation3], 0
          %s172 = sshll.u32 %s1, 4
          %s173 = int_to_ptr.hbm [resolvable:$true] %s172
          %s174 = sshll.u32 [#allocation2], 4
          %s175 = int_to_ptr.vmem [resolvable:$true] %s174
          %180 = dma.hbm_to_vmem [thread:$0]  %s173, 8192, %s175, [#allocation3], 256, 256, 16
        $region16: #{tpu_custom_call.1} parent=11 // pred_fallthru
          _
        // Predicated region
        $region17: #{tpu_custom_call.1} parent=11 // pred_check
          %p181 = pneg %p84
        $region18: #{tpu_custom_call.1} parent=11 // pred_check_branch
          %183 = sbr.rel (%p181) target = $region20
        $region19: #{tpu_custom_call.1} parent=11 // pred_region
          %185 = vsyncadd [#allocation6], 0
          %s186 = sshll.u32 %s2, 4
          %s187 = int_to_ptr.hbm [resolvable:$true] %s186
          %s188 = sshll.u32 [#allocation5], 4
          %s189 = int_to_ptr.vmem [resolvable:$true] %s188
          %194 = dma.hbm_to_vmem [thread:$0]  %s187, 8192, %s189, [#allocation6], 256, 256, 16
        $region20: #{tpu_custom_call.1} parent=11 // pred_fallthru
          _
        // Predicated region
        $region21: #{tpu_custom_call.1} parent=11 // pred_check
          %p195 = pneg %p105
        $region22: #{tpu_custom_call.1} parent=11 // pred_check_branch
          %197 = sbr.rel (%p195) target = $region24
        $region23: #{tpu_custom_call.1} parent=11 // pred_region
          _
        $region24: #{tpu_custom_call.1} parent=11 // pred_fallthru
          _
        // Predicated region
        $region25: #{tpu_custom_call.1} parent=11 // pred_check
          %p198 = pneg %p126
        $region26: #{tpu_custom_call.1} parent=11 // pred_check_branch
          %200 = sbr.rel (%p198) target = $region28
        $region27: #{tpu_custom_call.1} parent=11 // pred_region
          _
        $region28: #{tpu_custom_call.1} parent=11 // pred_fallthru
          _
      $region12: #{tpu_custom_call.1} parent=5 // pred_fallthru
        _
      %p201 = scmp.lt.s32.totalorder %s16, 2
      // Predicated region
      $region29: #{tpu_custom_call.1} parent=5 // pred_check
        %p202 = pneg %p201
      $region30: #{tpu_custom_call.1} parent=5 // pred_check_branch
        %204 = sbr.rel (%p202) target = $region32
      $region31: #{tpu_custom_call.1} parent=5 // pred_region
        // Predicated region
        $region33: #{tpu_custom_call.1} parent=31 // pred_check
          %p205 = pneg %p36
        $region34: #{tpu_custom_call.1} parent=31 // pred_check_branch
          %207 = sbr.rel (%p205) target = $region36
        $region35: #{tpu_custom_call.1} parent=31 // pred_region
          %p208 = scmp.lt.s32.totalorder %s16, 1
          %s209 = scalar_select %p208, %s16, 1
          %s210 = smul.addr %s209, 4
          %s211 = smul.addr %s210, 8
          %s212 = scalar_lea.vmem %s0, %s211
        $region36: #{tpu_custom_call.1} parent=31 // pred_fallthru
          _
      $region32: #{tpu_custom_call.1} parent=5 // pred_fallthru
        _
      %p213 = scmp.le.s32.totalorder 1, %s16
      %p214 = scmp.lt.s32.totalorder %s16, 3
      %p215 = pnand %p213, %p214
      %p216 = pneg %p215
      // Predicated region
      $region37: #{tpu_custom_call.1} parent=5 // pred_check
        _
      $region38: #{tpu_custom_call.1} parent=5 // pred_check_branch
        %218 = sbr.rel (%p215) target = $region40
      $region39: #{tpu_custom_call.1} parent=5 // pred_region
        %s219 = ssub.s32 %s16, 1
        // Predicated region
        $region41: #{tpu_custom_call.1} parent=39 // pred_check
          %p220 = pneg %p63
        $region42: #{tpu_custom_call.1} parent=39 // pred_check_branch
          %222 = sbr.rel (%p220) target = $region44
        $region43: #{tpu_custom_call.1} parent=39 // pred_region
          %224 = dma.done [#allocation3], 8192
        $region44: #{tpu_custom_call.1} parent=39 // pred_fallthru
          _
        // Predicated region
        $region45: #{tpu_custom_call.1} parent=39 // pred_check
          %p225 = pneg %p84
        $region46: #{tpu_custom_call.1} parent=39 // pred_check_branch
          %227 = sbr.rel (%p225) target = $region48
        $region47: #{tpu_custom_call.1} parent=39 // pred_region
          %229 = dma.done [#allocation6], 8192
        $region48: #{tpu_custom_call.1} parent=39 // pred_fallthru
          _
        %p230 = scmp.lt.s32.totalorder %s21, 1
        %s231 = scalar_select %p230, %s21, 1
        %s232 = smul.addr %s231, 4
        %s233 = smul.addr %s232, 8
        %s234 = scalar_lea.vmem %s0, %s233
        %p235 = pneg %p42
        %p236 = pneg %p39
        %p237 = pneg %p63
        %p238 = pneg %p60
        %p239 = pneg %p84
        %p240 = pneg %p81
        %p241 = pneg %p105
        %p242 = pneg %p102
        %p243 = pneg %p126
        %p244 = pneg %p123
        %p245 = pneg %p152
        %p246 = pneg %p149
        %s247 = sand.u32 %s139, 1
        %s248 = scalar_lea.sflag [#allocation4], %s247
        %s249 = sand.u32 %s139, 1
        %s250 = smul.addr %s249, 8
        %s251 = scalar_lea.vmem [#allocation7], %s250
        %p252 = scmp.lt.s32.totalorder %s21, 1
        %s253 = scalar_select %p252, %s21, 1
        %s254 = smul.addr %s253, 4
        %s255 = smul.addr %s254, 8
        %s256 = scalar_lea.vmem %s0, %s255
        %v257 = vld [vmem:[%s256] sm:$0xff]
        %v258 = vld [vmem:[%s256 + $0x8] sm:$0xff]
        %v259 = vpack.c.bf16 %v257, %v257
        %v260 = vpack.c.bf16 %v258, %v258
        %v261 = vld [vmem:[%s256] sm:$0xfe]
        %v262 = vld [vmem:[%s256 + $0x8] sm:$0xfe]
        %v263 = vld [vmem:[%s256 + $0x10] sm:$0x1]
        %v264 = vld [vmem:[%s256 + $0x18] sm:$0x1]
        %v265 = vpack.c.bf16 %v263, %v261
        %v266 = vpack.c.bf16 %v264, %v262
        %v267 = vld [vmem:[#allocation2] sm:$0xff]
        %v268 = vld [vmem:[#allocation2 + $0x8] sm:$0xff]
        %v269 = vld [vmem:[#allocation2 + $0x10] sm:$0xff]
        %v270 = vld [vmem:[#allocation2 + $0x18] sm:$0xff]
        %v271 = vld [vmem:[#allocation2 + $0x20] sm:$0xff]
        %v272 = vld [vmem:[#allocation2 + $0x28] sm:$0xff]
        %v273 = vld [vmem:[#allocation2 + $0x30] sm:$0xff]
        %v274 = vld [vmem:[#allocation2 + $0x38] sm:$0xff]
        %v275 = vld [vmem:[#allocation2 + $0x40] sm:$0xff]
        %v276 = vld [vmem:[#allocation2 + $0x48] sm:$0xff]
        %v277 = vld [vmem:[#allocation2 + $0x50] sm:$0xff]
        %v278 = vld [vmem:[#allocation2 + $0x58] sm:$0xff]
        %v279 = vld [vmem:[#allocation2 + $0x60] sm:$0xff]
        %v280 = vld [vmem:[#allocation2 + $0x68] sm:$0xff]
        %v281 = vld [vmem:[#allocation2 + $0x70] sm:$0xff]
        %v282 = vld [vmem:[#allocation2 + $0x78] sm:$0xff]
        %v283 = vld [vmem:[#allocation2 + $0x80] sm:$0xff]
        %v284 = vld [vmem:[#allocation2 + $0x88] sm:$0xff]
        %v285 = vld [vmem:[#allocation2 + $0x90] sm:$0xff]
        %v286 = vld [vmem:[#allocation2 + $0x98] sm:$0xff]
        %v287 = vld [vmem:[#allocation2 + $0xa0] sm:$0xff]
        %v288 = vld [vmem:[#allocation2 + $0xa8] sm:$0xff]
        %v289 = vld [vmem:[#allocation2 + $0xb0] sm:$0xff]
        %v290 = vld [vmem:[#allocation2 + $0xb8] sm:$0xff]
        %v291 = vld [vmem:[#allocation2 + $0xc0] sm:$0xff]
        %v292 = vld [vmem:[#allocation2 + $0xc8] sm:$0xff]
        %v293 = vld [vmem:[#allocation2 + $0xd0] sm:$0xff]
        %v294 = vld [vmem:[#allocation2 + $0xd8] sm:$0xff]
        %v295 = vld [vmem:[#allocation2 + $0xe0] sm:$0xff]
        %v296 = vld [vmem:[#allocation2 + $0xe8] sm:$0xff]
        %v297 = vld [vmem:[#allocation2 + $0xf0] sm:$0xff]
        %v298 = vld [vmem:[#allocation2 + $0xf8] sm:$0xff]
        %v299 = vld [vmem:[#allocation2 + $0x100] sm:$0xff]
        %v300 = vld [vmem:[#allocation2 + $0x108] sm:$0xff]
        %v301 = vld [vmem:[#allocation2 + $0x110] sm:$0xff]
        %v302 = vld [vmem:[#allocation2 + $0x118] sm:$0xff]
        %v303 = vld [vmem:[#allocation2 + $0x120] sm:$0xff]
        %v304 = vld [vmem:[#allocation2 + $0x128] sm:$0xff]
        %v305 = vld [vmem:[#allocation2 + $0x130] sm:$0xff]
        %v306 = vld [vmem:[#allocation2 + $0x138] sm:$0xff]
        %v307 = vld [vmem:[#allocation2 + $0x140] sm:$0xff]
        %v308 = vld [vmem:[#allocation2 + $0x148] sm:$0xff]
        %v309 = vld [vmem:[#allocation2 + $0x150] sm:$0xff]
        %v310 = vld [vmem:[#allocation2 + $0x158] sm:$0xff]
        %v311 = vld [vmem:[#allocation2 + $0x160] sm:$0xff]
        %v312 = vld [vmem:[#allocation2 + $0x168] sm:$0xff]
        %v313 = vld [vmem:[#allocation2 + $0x170] sm:$0xff]
        %v314 = vld [vmem:[#allocation2 + $0x178] sm:$0xff]
        %v315 = vld [vmem:[#allocation2 + $0x180] sm:$0xff]
        %v316 = vld [vmem:[#allocation2 + $0x188] sm:$0xff]
        %v317 = vld [vmem:[#allocation2 + $0x190] sm:$0xff]
        %v318 = vld [vmem:[#allocation2 + $0x198] sm:$0xff]
        %v319 = vld [vmem:[#allocation2 + $0x1a0] sm:$0xff]
        %v320 = vld [vmem:[#allocation2 + $0x1a8] sm:$0xff]
        %v321 = vld [vmem:[#allocation2 + $0x1b0] sm:$0xff]
        %v322 = vld [vmem:[#allocation2 + $0x1b8] sm:$0xff]
        %v323 = vld [vmem:[#allocation2 + $0x1c0] sm:$0xff]
        %v324 = vld [vmem:[#allocation2 + $0x1c8] sm:$0xff]
        %v325 = vld [vmem:[#allocation2 + $0x1d0] sm:$0xff]
        %v326 = vld [vmem:[#allocation2 + $0x1d8] sm:$0xff]
        %v327 = vld [vmem:[#allocation2 + $0x1e0] sm:$0xff]
        %v328 = vld [vmem:[#allocation2 + $0x1e8] sm:$0xff]
        %v329 = vld [vmem:[#allocation2 + $0x1f0] sm:$0xff]
        %v330 = vld [vmem:[#allocation2 + $0x1f8] sm:$0xff]
        %v331 = vld [vmem:[#allocation5] sm:$0xff]
        %v332 = vld [vmem:[#allocation5 + $0x8] sm:$0xff]
        %v333 = vld [vmem:[#allocation5 + $0x10] sm:$0xff]
        %v334 = vld [vmem:[#allocation5 + $0x18] sm:$0xff]
        %v335 = vld [vmem:[#allocation5 + $0x20] sm:$0xff]
        %v336 = vld [vmem:[#allocation5 + $0x28] sm:$0xff]
        %v337 = vld [vmem:[#allocation5 + $0x30] sm:$0xff]
        %v338 = vld [vmem:[#allocation5 + $0x38] sm:$0xff]
        %v339 = vld [vmem:[#allocation5 + $0x40] sm:$0xff]
        %v340 = vld [vmem:[#allocation5 + $0x48] sm:$0xff]
        %v341 = vld [vmem:[#allocation5 + $0x50] sm:$0xff]
        %v342 = vld [vmem:[#allocation5 + $0x58] sm:$0xff]
        %v343 = vld [vmem:[#allocation5 + $0x60] sm:$0xff]
        %v344 = vld [vmem:[#allocation5 + $0x68] sm:$0xff]
        %v345 = vld [vmem:[#allocation5 + $0x70] sm:$0xff]
        %v346 = vld [vmem:[#allocation5 + $0x78] sm:$0xff]
        %v347 = vld [vmem:[#allocation5 + $0x80] sm:$0xff]
        %v348 = vld [vmem:[#allocation5 + $0x88] sm:$0xff]
        %v349 = vld [vmem:[#allocation5 + $0x90] sm:$0xff]
        %v350 = vld [vmem:[#allocation5 + $0x98] sm:$0xff]
        %v351 = vld [vmem:[#allocation5 + $0xa0] sm:$0xff]
        %v352 = vld [vmem:[#allocation5 + $0xa8] sm:$0xff]
        %v353 = vld [vmem:[#allocation5 + $0xb0] sm:$0xff]
        %v354 = vld [vmem:[#allocation5 + $0xb8] sm:$0xff]
        %v355 = vld [vmem:[#allocation5 + $0xc0] sm:$0xff]
        %v356 = vld [vmem:[#allocation5 + $0xc8] sm:$0xff]
        %v357 = vld [vmem:[#allocation5 + $0xd0] sm:$0xff]
        %v358 = vld [vmem:[#allocation5 + $0xd8] sm:$0xff]
        %v359 = vld [vmem:[#allocation5 + $0xe0] sm:$0xff]
        %v360 = vld [vmem:[#allocation5 + $0xe8] sm:$0xff]
        %v361 = vld [vmem:[#allocation5 + $0xf0] sm:$0xff]
        %v362 = vld [vmem:[#allocation5 + $0xf8] sm:$0xff]
        %v363 = vld [vmem:[#allocation5 + $0x100] sm:$0xff]
        %v364 = vld [vmem:[#allocation5 + $0x108] sm:$0xff]
        %v365 = vld [vmem:[#allocation5 + $0x110] sm:$0xff]
        %v366 = vld [vmem:[#allocation5 + $0x118] sm:$0xff]
        %v367 = vld [vmem:[#allocation5 + $0x120] sm:$0xff]
        %v368 = vld [vmem:[#allocation5 + $0x128] sm:$0xff]
        %v369 = vld [vmem:[#allocation5 + $0x130] sm:$0xff]
        %v370 = vld [vmem:[#allocation5 + $0x138] sm:$0xff]
        %v371 = vld [vmem:[#allocation5 + $0x140] sm:$0xff]
        %v372 = vld [vmem:[#allocation5 + $0x148] sm:$0xff]
        %v373 = vld [vmem:[#allocation5 + $0x150] sm:$0xff]
        %v374 = vld [vmem:[#allocation5 + $0x158] sm:$0xff]
        %v375 = vld [vmem:[#allocation5 + $0x160] sm:$0xff]
        %v376 = vld [vmem:[#allocation5 + $0x168] sm:$0xff]
        %v377 = vld [vmem:[#allocation5 + $0x170] sm:$0xff]
        %v378 = vld [vmem:[#allocation5 + $0x178] sm:$0xff]
        %v379 = vld [vmem:[#allocation5 + $0x180] sm:$0xff]
        %v380 = vld [vmem:[#allocation5 + $0x188] sm:$0xff]
        %v381 = vld [vmem:[#allocation5 + $0x190] sm:$0xff]
        %v382 = vld [vmem:[#allocation5 + $0x198] sm:$0xff]
        %v383 = vld [vmem:[#allocation5 + $0x1a0] sm:$0xff]
        %v384 = vld [vmem:[#allocation5 + $0x1a8] sm:$0xff]
        %v385 = vld [vmem:[#allocation5 + $0x1b0] sm:$0xff]
        %v386 = vld [vmem:[#allocation5 + $0x1b8] sm:$0xff]
        %v387 = vld [vmem:[#allocation5 + $0x1c0] sm:$0xff]
        %v388 = vld [vmem:[#allocation5 + $0x1c8] sm:$0xff]
        %v389 = vld [vmem:[#allocation5 + $0x1d0] sm:$0xff]
        %v390 = vld [vmem:[#allocation5 + $0x1d8] sm:$0xff]
        %v391 = vld [vmem:[#allocation5 + $0x1e0] sm:$0xff]
        %v392 = vld [vmem:[#allocation5 + $0x1e8] sm:$0xff]
        %v393 = vld [vmem:[#allocation5 + $0x1f0] sm:$0xff]
        %v394 = vld [vmem:[#allocation5 + $0x1f8] sm:$0xff]
        %v396 = vshrl.u32 %v265, 16
        %v398 = vshll.u32 %v265, 16
        %v400 = vrot.slane %v398, 1
        %v401 = vor.u32 %v396, %v400
        %v403 = vshrl.u32 %v266, 16
        %v405 = vshll.u32 %v266, 16
        %v407 = vrot.slane %v405, 1
        %v408 = vor.u32 %v403, %v407
        %v475 = vunpack.c.l.b16 %v331
        %v476 = vunpack.c.h.b16 %v331
        %v477 = vunpack.c.l.b16 %v332
        %v478 = vunpack.c.h.b16 %v332
        %v479 = vunpack.c.l.b16 %v333
        %v480 = vunpack.c.h.b16 %v333
        %v481 = vunpack.c.l.b16 %v334
        %v482 = vunpack.c.h.b16 %v334
        %v483 = vunpack.c.l.b16 %v335
        %v484 = vunpack.c.h.b16 %v335
        %v485 = vunpack.c.l.b16 %v336
        %v486 = vunpack.c.h.b16 %v336
        %v487 = vunpack.c.l.b16 %v337
        %v488 = vunpack.c.h.b16 %v337
        %v489 = vunpack.c.l.b16 %v338
        %v490 = vunpack.c.h.b16 %v338
        %v491 = vunpack.c.l.b16 %v339
        %v492 = vunpack.c.h.b16 %v339
        %v493 = vunpack.c.l.b16 %v340
        %v494 = vunpack.c.h.b16 %v340
        %v495 = vunpack.c.l.b16 %v341
        %v496 = vunpack.c.h.b16 %v341
        %v497 = vunpack.c.l.b16 %v342
        %v498 = vunpack.c.h.b16 %v342
        %v499 = vunpack.c.l.b16 %v343
        %v500 = vunpack.c.h.b16 %v343
        %v501 = vunpack.c.l.b16 %v344
        %v502 = vunpack.c.h.b16 %v344
        %v503 = vunpack.c.l.b16 %v345
        %v504 = vunpack.c.h.b16 %v345
        %v505 = vunpack.c.l.b16 %v346
        %v506 = vunpack.c.h.b16 %v346
        %v507 = vunpack.c.l.b16 %v347
        %v508 = vunpack.c.h.b16 %v347
        %v509 = vunpack.c.l.b16 %v348
        %v510 = vunpack.c.h.b16 %v348
        %v511 = vunpack.c.l.b16 %v349
        %v512 = vunpack.c.h.b16 %v349
        %v513 = vunpack.c.l.b16 %v350
        %v514 = vunpack.c.h.b16 %v350
        %v515 = vunpack.c.l.b16 %v351
        %v516 = vunpack.c.h.b16 %v351
        %v517 = vunpack.c.l.b16 %v352
        %v518 = vunpack.c.h.b16 %v352
        %v519 = vunpack.c.l.b16 %v353
        %v520 = vunpack.c.h.b16 %v353
        %v521 = vunpack.c.l.b16 %v354
        %v522 = vunpack.c.h.b16 %v354
        %v523 = vunpack.c.l.b16 %v355
        %v524 = vunpack.c.h.b16 %v355
        %v525 = vunpack.c.l.b16 %v356
        %v526 = vunpack.c.h.b16 %v356
        %v527 = vunpack.c.l.b16 %v357
        %v528 = vunpack.c.h.b16 %v357
        %v529 = vunpack.c.l.b16 %v358
        %v530 = vunpack.c.h.b16 %v358
        %v531 = vunpack.c.l.b16 %v359
        %v532 = vunpack.c.h.b16 %v359
        %v533 = vunpack.c.l.b16 %v360
        %v534 = vunpack.c.h.b16 %v360
        %v535 = vunpack.c.l.b16 %v361
        %v536 = vunpack.c.h.b16 %v361
        %v537 = vunpack.c.l.b16 %v362
        %v538 = vunpack.c.h.b16 %v362
        %v539 = vunpack.c.l.b16 %v363
        %v540 = vunpack.c.h.b16 %v363
        %v541 = vunpack.c.l.b16 %v364
        %v542 = vunpack.c.h.b16 %v364
        %v543 = vunpack.c.l.b16 %v365
        %v544 = vunpack.c.h.b16 %v365
        %v545 = vunpack.c.l.b16 %v366
        %v546 = vunpack.c.h.b16 %v366
        %v547 = vunpack.c.l.b16 %v367
        %v548 = vunpack.c.h.b16 %v367
        %v549 = vunpack.c.l.b16 %v368
        %v550 = vunpack.c.h.b16 %v368
        %v551 = vunpack.c.l.b16 %v369
        %v552 = vunpack.c.h.b16 %v369
        %v553 = vunpack.c.l.b16 %v370
        %v554 = vunpack.c.h.b16 %v370
        %v555 = vunpack.c.l.b16 %v371
        %v556 = vunpack.c.h.b16 %v371
        %v557 = vunpack.c.l.b16 %v372
        %v558 = vunpack.c.h.b16 %v372
        %v559 = vunpack.c.l.b16 %v373
        %v560 = vunpack.c.h.b16 %v373
        %v561 = vunpack.c.l.b16 %v374
        %v562 = vunpack.c.h.b16 %v374
        %v563 = vunpack.c.l.b16 %v375
        %v564 = vunpack.c.h.b16 %v375
        %v565 = vunpack.c.l.b16 %v376
        %v566 = vunpack.c.h.b16 %v376
        %v567 = vunpack.c.l.b16 %v377
        %v568 = vunpack.c.h.b16 %v377
        %v569 = vunpack.c.l.b16 %v378
        %v570 = vunpack.c.h.b16 %v378
        %v571 = vunpack.c.l.b16 %v379
        %v572 = vunpack.c.h.b16 %v379
        %v573 = vunpack.c.l.b16 %v380
        %v574 = vunpack.c.h.b16 %v380
        %v575 = vunpack.c.l.b16 %v381
        %v576 = vunpack.c.h.b16 %v381
        %v577 = vunpack.c.l.b16 %v382
        %v578 = vunpack.c.h.b16 %v382
        %v579 = vunpack.c.l.b16 %v383
        %v580 = vunpack.c.h.b16 %v383
        %v581 = vunpack.c.l.b16 %v384
        %v582 = vunpack.c.h.b16 %v384
        %v583 = vunpack.c.l.b16 %v385
        %v584 = vunpack.c.h.b16 %v385
        %v585 = vunpack.c.l.b16 %v386
        %v586 = vunpack.c.h.b16 %v386
        %v587 = vunpack.c.l.b16 %v387
        %v588 = vunpack.c.h.b16 %v387
        %v589 = vunpack.c.l.b16 %v388
        %v590 = vunpack.c.h.b16 %v388
        %v591 = vunpack.c.l.b16 %v389
        %v592 = vunpack.c.h.b16 %v389
        %v593 = vunpack.c.l.b16 %v390
        %v594 = vunpack.c.h.b16 %v390
        %v595 = vunpack.c.l.b16 %v391
        %v596 = vunpack.c.h.b16 %v391
        %v597 = vunpack.c.l.b16 %v392
        %v598 = vunpack.c.h.b16 %v392
        %v599 = vunpack.c.l.b16 %v393
        %v600 = vunpack.c.h.b16 %v393
        %v601 = vunpack.c.l.b16 %v394
        %v602 = vunpack.c.h.b16 %v394
        %v603 = vpack.c.b16 %v479, %v475
        %v604 = vpack.c.b16 %v480, %v476
        %v605 = vpack.c.b16 %v481, %v477
        %v606 = vpack.c.b16 %v482, %v478
        %v607 = vpack.c.b16 %v487, %v483
        %v608 = vpack.c.b16 %v488, %v484
        %v609 = vpack.c.b16 %v489, %v485
        %v610 = vpack.c.b16 %v490, %v486
        %v611 = vpack.c.b16 %v495, %v491
        %v612 = vpack.c.b16 %v496, %v492
        %v613 = vpack.c.b16 %v497, %v493
        %v614 = vpack.c.b16 %v498, %v494
        %v615 = vpack.c.b16 %v503, %v499
        %v616 = vpack.c.b16 %v504, %v500
        %v617 = vpack.c.b16 %v505, %v501
        %v618 = vpack.c.b16 %v506, %v502
        %v619 = vpack.c.b16 %v511, %v507
        %v620 = vpack.c.b16 %v512, %v508
        %v621 = vpack.c.b16 %v513, %v509
        %v622 = vpack.c.b16 %v514, %v510
        %v623 = vpack.c.b16 %v519, %v515
        %v624 = vpack.c.b16 %v520, %v516
        %v625 = vpack.c.b16 %v521, %v517
        %v626 = vpack.c.b16 %v522, %v518
        %v627 = vpack.c.b16 %v527, %v523
        %v628 = vpack.c.b16 %v528, %v524
        %v629 = vpack.c.b16 %v529, %v525
        %v630 = vpack.c.b16 %v530, %v526
        %v631 = vpack.c.b16 %v535, %v531
        %v632 = vpack.c.b16 %v536, %v532
        %v633 = vpack.c.b16 %v537, %v533
        %v634 = vpack.c.b16 %v538, %v534
        %v635 = vpack.c.b16 %v543, %v539
        %v636 = vpack.c.b16 %v544, %v540
        %v637 = vpack.c.b16 %v545, %v541
        %v638 = vpack.c.b16 %v546, %v542
        %v639 = vpack.c.b16 %v551, %v547
        %v640 = vpack.c.b16 %v552, %v548
        %v641 = vpack.c.b16 %v553, %v549
        %v642 = vpack.c.b16 %v554, %v550
        %v643 = vpack.c.b16 %v559, %v555
        %v644 = vpack.c.b16 %v560, %v556
        %v645 = vpack.c.b16 %v561, %v557
        %v646 = vpack.c.b16 %v562, %v558
        %v647 = vpack.c.b16 %v567, %v563
        %v648 = vpack.c.b16 %v568, %v564
        %v649 = vpack.c.b16 %v569, %v565
        %v650 = vpack.c.b16 %v570, %v566
        %v651 = vpack.c.b16 %v575, %v571
        %v652 = vpack.c.b16 %v576, %v572
        %v653 = vpack.c.b16 %v577, %v573
        %v654 = vpack.c.b16 %v578, %v574
        %v655 = vpack.c.b16 %v583, %v579
        %v656 = vpack.c.b16 %v584, %v580
        %v657 = vpack.c.b16 %v585, %v581
        %v658 = vpack.c.b16 %v586, %v582
        %v659 = vpack.c.b16 %v591, %v587
        %v660 = vpack.c.b16 %v592, %v588
        %v661 = vpack.c.b16 %v593, %v589
        %v662 = vpack.c.b16 %v594, %v590
        %v663 = vpack.c.b16 %v599, %v595
        %v664 = vpack.c.b16 %v600, %v596
        %v665 = vpack.c.b16 %v601, %v597
        %v666 = vpack.c.b16 %v602, %v598
        %731 = vmatpush.bf16.msra.mxu0 %v631
        %732 = vmatpush.bf16.msra.mxu0 %v627
        %733 = vmatpush.bf16.msra.mxu0 %v623
        %734 = vmatpush.bf16.msra.mxu0 %v619
        %735 = vmatpush.bf16.msra.mxu0 %v615
        %736 = vmatpush.bf16.msra.mxu0 %v611
        %737 = vmatpush.bf16.msra.mxu0 %v607
        %738 = vmatpush.bf16.msra.mxu0 %v603
        %739 = vmatmul.bf16.gmra.mxu0 %v401
        %v740 = vpop.f32.mrf.mxu0
        %v741 = vadd.f32 0.0, %v740
        %v742 = vpop.f32.mrf.mxu0
        %743 = vdwg.mxu0
        %744 = vmatpush.bf16.msra.mxu0 %v663
        %745 = vmatpush.bf16.msra.mxu0 %v659
        %746 = vmatpush.bf16.msra.mxu0 %v655
        %747 = vmatpush.bf16.msra.mxu0 %v651
        %748 = vmatpush.bf16.msra.mxu0 %v647
        %749 = vmatpush.bf16.msra.mxu0 %v643
        %750 = vmatpush.bf16.msra.mxu0 %v639
        %751 = vmatpush.bf16.msra.mxu0 %v635
        %752 = vmatmul.bf16.gmra.mxu0 %v408
        %v753 = vpop.f32.mrf.mxu0
        %v754 = vadd.f32 %v741, %v753
        %v755 = vpop.f32.mrf.mxu0
        %756 = vdwg.mxu0
        %757 = vmatpush.bf16.msra.mxu0 %v632
        %758 = vmatpush.bf16.msra.mxu0 %v628
        %759 = vmatpush.bf16.msra.mxu0 %v624
        %760 = vmatpush.bf16.msra.mxu0 %v620
        %761 = vmatpush.bf16.msra.mxu0 %v616
        %762 = vmatpush.bf16.msra.mxu0 %v612
        %763 = vmatpush.bf16.msra.mxu0 %v608
        %764 = vmatpush.bf16.msra.mxu0 %v604
        %765 = vmatmul.bf16.gmra.mxu0 %v401
        %v766 = vpop.f32.mrf.mxu0
        %v767 = vadd.f32 0.0, %v766
        %v768 = vpop.f32.mrf.mxu0
        %769 = vdwg.mxu0
        %770 = vmatpush.bf16.msra.mxu0 %v664
        %771 = vmatpush.bf16.msra.mxu0 %v660
        %772 = vmatpush.bf16.msra.mxu0 %v656
        %773 = vmatpush.bf16.msra.mxu0 %v652
        %774 = vmatpush.bf16.msra.mxu0 %v648
        %775 = vmatpush.bf16.msra.mxu0 %v644
        %776 = vmatpush.bf16.msra.mxu0 %v640
        %777 = vmatpush.bf16.msra.mxu0 %v636
        %778 = vmatmul.bf16.gmra.mxu0 %v408
        %v779 = vpop.f32.mrf.mxu0
        %v780 = vadd.f32 %v767, %v779
        %v781 = vpop.f32.mrf.mxu0
        %782 = vdwg.mxu0
        %783 = vmatpush.bf16.msra.mxu0 %v633
        %784 = vmatpush.bf16.msra.mxu0 %v629
        %785 = vmatpush.bf16.msra.mxu0 %v625
        %786 = vmatpush.bf16.msra.mxu0 %v621
        %787 = vmatpush.bf16.msra.mxu0 %v617
        %788 = vmatpush.bf16.msra.mxu0 %v613
        %789 = vmatpush.bf16.msra.mxu0 %v609
        %790 = vmatpush.bf16.msra.mxu0 %v605
        %791 = vmatmul.bf16.gmra.mxu0 %v401
        %v792 = vpop.f32.mrf.mxu0
        %v793 = vadd.f32 0.0, %v792
        %v794 = vpop.f32.mrf.mxu0
        %795 = vdwg.mxu0
        %796 = vmatpush.bf16.msra.mxu0 %v665
        %797 = vmatpush.bf16.msra.mxu0 %v661
        %798 = vmatpush.bf16.msra.mxu0 %v657
        %799 = vmatpush.bf16.msra.mxu0 %v653
        %800 = vmatpush.bf16.msra.mxu0 %v649
        %801 = vmatpush.bf16.msra.mxu0 %v645
        %802 = vmatpush.bf16.msra.mxu0 %v641
        %803 = vmatpush.bf16.msra.mxu0 %v637
        %804 = vmatmul.bf16.gmra.mxu0 %v408
        %v805 = vpop.f32.mrf.mxu0
        %v806 = vadd.f32 %v793, %v805
        %v807 = vpop.f32.mrf.mxu0
        %808 = vdwg.mxu0
        %809 = vmatpush.bf16.msra.mxu0 %v634
        %810 = vmatpush.bf16.msra.mxu0 %v630
        %811 = vmatpush.bf16.msra.mxu0 %v626
        %812 = vmatpush.bf16.msra.mxu0 %v622
        %813 = vmatpush.bf16.msra.mxu0 %v618
        %814 = vmatpush.bf16.msra.mxu0 %v614
        %815 = vmatpush.bf16.msra.mxu0 %v610
        %816 = vmatpush.bf16.msra.mxu0 %v606
        %817 = vmatmul.bf16.gmra.mxu0 %v401
        %v818 = vpop.f32.mrf.mxu0
        %v819 = vadd.f32 0.0, %v818
        %v820 = vpop.f32.mrf.mxu0
        %821 = vdwg.mxu0
        %822 = vmatpush.bf16.msra.mxu0 %v666
        %823 = vmatpush.bf16.msra.mxu0 %v662
        %824 = vmatpush.bf16.msra.mxu0 %v658
        %825 = vmatpush.bf16.msra.mxu0 %v654
        %826 = vmatpush.bf16.msra.mxu0 %v650
        %827 = vmatpush.bf16.msra.mxu0 %v646
        %828 = vmatpush.bf16.msra.mxu0 %v642
        %829 = vmatpush.bf16.msra.mxu0 %v638
        %830 = vmatmul.bf16.gmra.mxu0 %v408
        %v831 = vpop.f32.mrf.mxu0
        %v832 = vadd.f32 %v819, %v831
        %v833 = vpop.f32.mrf.mxu0
        %834 = vdwg.mxu0
        %v899 = vunpack.c.l.b16 %v267
        %v900 = vunpack.c.h.b16 %v267
        %v901 = vunpack.c.l.b16 %v268
        %v902 = vunpack.c.h.b16 %v268
        %v903 = vunpack.c.l.b16 %v269
        %v904 = vunpack.c.h.b16 %v269
        %v905 = vunpack.c.l.b16 %v270
        %v906 = vunpack.c.h.b16 %v270
        %v907 = vunpack.c.l.b16 %v271
        %v908 = vunpack.c.h.b16 %v271
        %v909 = vunpack.c.l.b16 %v272
        %v910 = vunpack.c.h.b16 %v272
        %v911 = vunpack.c.l.b16 %v273
        %v912 = vunpack.c.h.b16 %v273
        %v913 = vunpack.c.l.b16 %v274
        %v914 = vunpack.c.h.b16 %v274
        %v915 = vunpack.c.l.b16 %v275
        %v916 = vunpack.c.h.b16 %v275
        %v917 = vunpack.c.l.b16 %v276
        %v918 = vunpack.c.h.b16 %v276
        %v919 = vunpack.c.l.b16 %v277
        %v920 = vunpack.c.h.b16 %v277
        %v921 = vunpack.c.l.b16 %v278
        %v922 = vunpack.c.h.b16 %v278
        %v923 = vunpack.c.l.b16 %v279
        %v924 = vunpack.c.h.b16 %v279
        %v925 = vunpack.c.l.b16 %v280
        %v926 = vunpack.c.h.b16 %v280
        %v927 = vunpack.c.l.b16 %v281
        %v928 = vunpack.c.h.b16 %v281
        %v929 = vunpack.c.l.b16 %v282
        %v930 = vunpack.c.h.b16 %v282
        %v931 = vunpack.c.l.b16 %v283
        %v932 = vunpack.c.h.b16 %v283
        %v933 = vunpack.c.l.b16 %v284
        %v934 = vunpack.c.h.b16 %v284
        %v935 = vunpack.c.l.b16 %v285
        %v936 = vunpack.c.h.b16 %v285
        %v937 = vunpack.c.l.b16 %v286
        %v938 = vunpack.c.h.b16 %v286
        %v939 = vunpack.c.l.b16 %v287
        %v940 = vunpack.c.h.b16 %v287
        %v941 = vunpack.c.l.b16 %v288
        %v942 = vunpack.c.h.b16 %v288
        %v943 = vunpack.c.l.b16 %v289
        %v944 = vunpack.c.h.b16 %v289
        %v945 = vunpack.c.l.b16 %v290
        %v946 = vunpack.c.h.b16 %v290
        %v947 = vunpack.c.l.b16 %v291
        %v948 = vunpack.c.h.b16 %v291
        %v949 = vunpack.c.l.b16 %v292
        %v950 = vunpack.c.h.b16 %v292
        %v951 = vunpack.c.l.b16 %v293
        %v952 = vunpack.c.h.b16 %v293
        %v953 = vunpack.c.l.b16 %v294
        %v954 = vunpack.c.h.b16 %v294
        %v955 = vunpack.c.l.b16 %v295
        %v956 = vunpack.c.h.b16 %v295
        %v957 = vunpack.c.l.b16 %v296
        %v958 = vunpack.c.h.b16 %v296
        %v959 = vunpack.c.l.b16 %v297
        %v960 = vunpack.c.h.b16 %v297
        %v961 = vunpack.c.l.b16 %v298
        %v962 = vunpack.c.h.b16 %v298
        %v963 = vunpack.c.l.b16 %v299
        %v964 = vunpack.c.h.b16 %v299
        %v965 = vunpack.c.l.b16 %v300
        %v966 = vunpack.c.h.b16 %v300
        %v967 = vunpack.c.l.b16 %v301
        %v968 = vunpack.c.h.b16 %v301
        %v969 = vunpack.c.l.b16 %v302
        %v970 = vunpack.c.h.b16 %v302
        %v971 = vunpack.c.l.b16 %v303
        %v972 = vunpack.c.h.b16 %v303
        %v973 = vunpack.c.l.b16 %v304
        %v974 = vunpack.c.h.b16 %v304
        %v975 = vunpack.c.l.b16 %v305
        %v976 = vunpack.c.h.b16 %v305
        %v977 = vunpack.c.l.b16 %v306
        %v978 = vunpack.c.h.b16 %v306
        %v979 = vunpack.c.l.b16 %v307
        %v980 = vunpack.c.h.b16 %v307
        %v981 = vunpack.c.l.b16 %v308
        %v982 = vunpack.c.h.b16 %v308
        %v983 = vunpack.c.l.b16 %v309
        %v984 = vunpack.c.h.b16 %v309
        %v985 = vunpack.c.l.b16 %v310
        %v986 = vunpack.c.h.b16 %v310
        %v987 = vunpack.c.l.b16 %v311
        %v988 = vunpack.c.h.b16 %v311
        %v989 = vunpack.c.l.b16 %v312
        %v990 = vunpack.c.h.b16 %v312
        %v991 = vunpack.c.l.b16 %v313
        %v992 = vunpack.c.h.b16 %v313
        %v993 = vunpack.c.l.b16 %v314
        %v994 = vunpack.c.h.b16 %v314
        %v995 = vunpack.c.l.b16 %v315
        %v996 = vunpack.c.h.b16 %v315
        %v997 = vunpack.c.l.b16 %v316
        %v998 = vunpack.c.h.b16 %v316
        %v999 = vunpack.c.l.b16 %v317
        %v1000 = vunpack.c.h.b16 %v317
        %v1001 = vunpack.c.l.b16 %v318
        %v1002 = vunpack.c.h.b16 %v318
        %v1003 = vunpack.c.l.b16 %v319
        %v1004 = vunpack.c.h.b16 %v319
        %v1005 = vunpack.c.l.b16 %v320
        %v1006 = vunpack.c.h.b16 %v320
        %v1007 = vunpack.c.l.b16 %v321
        %v1008 = vunpack.c.h.b16 %v321
        %v1009 = vunpack.c.l.b16 %v322
        %v1010 = vunpack.c.h.b16 %v322
        %v1011 = vunpack.c.l.b16 %v323
        %v1012 = vunpack.c.h.b16 %v323
        %v1013 = vunpack.c.l.b16 %v324
        %v1014 = vunpack.c.h.b16 %v324
        %v1015 = vunpack.c.l.b16 %v325
        %v1016 = vunpack.c.h.b16 %v325
        %v1017 = vunpack.c.l.b16 %v326
        %v1018 = vunpack.c.h.b16 %v326
        %v1019 = vunpack.c.l.b16 %v327
        %v1020 = vunpack.c.h.b16 %v327
        %v1021 = vunpack.c.l.b16 %v328
        %v1022 = vunpack.c.h.b16 %v328
        %v1023 = vunpack.c.l.b16 %v329
        %v1024 = vunpack.c.h.b16 %v329
        %v1025 = vunpack.c.l.b16 %v330
        %v1026 = vunpack.c.h.b16 %v330
        %v1027 = vpack.c.b16 %v903, %v899
        %v1028 = vpack.c.b16 %v904, %v900
        %v1029 = vpack.c.b16 %v905, %v901
        %v1030 = vpack.c.b16 %v906, %v902
        %v1031 = vpack.c.b16 %v911, %v907
        %v1032 = vpack.c.b16 %v912, %v908
        %v1033 = vpack.c.b16 %v913, %v909
        %v1034 = vpack.c.b16 %v914, %v910
        %v1035 = vpack.c.b16 %v919, %v915
        %v1036 = vpack.c.b16 %v920, %v916
        %v1037 = vpack.c.b16 %v921, %v917
        %v1038 = vpack.c.b16 %v922, %v918
        %v1039 = vpack.c.b16 %v927, %v923
        %v1040 = vpack.c.b16 %v928, %v924
        %v1041 = vpack.c.b16 %v929, %v925
        %v1042 = vpack.c.b16 %v930, %v926
        %v1043 = vpack.c.b16 %v935, %v931
        %v1044 = vpack.c.b16 %v936, %v932
        %v1045 = vpack.c.b16 %v937, %v933
        %v1046 = vpack.c.b16 %v938, %v934
        %v1047 = vpack.c.b16 %v943, %v939
        %v1048 = vpack.c.b16 %v944, %v940
        %v1049 = vpack.c.b16 %v945, %v941
        %v1050 = vpack.c.b16 %v946, %v942
        %v1051 = vpack.c.b16 %v951, %v947
        %v1052 = vpack.c.b16 %v952, %v948
        %v1053 = vpack.c.b16 %v953, %v949
        %v1054 = vpack.c.b16 %v954, %v950
        %v1055 = vpack.c.b16 %v959, %v955
        %v1056 = vpack.c.b16 %v960, %v956
        %v1057 = vpack.c.b16 %v961, %v957
        %v1058 = vpack.c.b16 %v962, %v958
        %v1059 = vpack.c.b16 %v967, %v963
        %v1060 = vpack.c.b16 %v968, %v964
        %v1061 = vpack.c.b16 %v969, %v965
        %v1062 = vpack.c.b16 %v970, %v966
        %v1063 = vpack.c.b16 %v975, %v971
        %v1064 = vpack.c.b16 %v976, %v972
        %v1065 = vpack.c.b16 %v977, %v973
        %v1066 = vpack.c.b16 %v978, %v974
        %v1067 = vpack.c.b16 %v983, %v979
        %v1068 = vpack.c.b16 %v984, %v980
        %v1069 = vpack.c.b16 %v985, %v981
        %v1070 = vpack.c.b16 %v986, %v982
        %v1071 = vpack.c.b16 %v991, %v987
        %v1072 = vpack.c.b16 %v992, %v988
        %v1073 = vpack.c.b16 %v993, %v989
        %v1074 = vpack.c.b16 %v994, %v990
        %v1075 = vpack.c.b16 %v999, %v995
        %v1076 = vpack.c.b16 %v1000, %v996
        %v1077 = vpack.c.b16 %v1001, %v997
        %v1078 = vpack.c.b16 %v1002, %v998
        %v1079 = vpack.c.b16 %v1007, %v1003
        %v1080 = vpack.c.b16 %v1008, %v1004
        %v1081 = vpack.c.b16 %v1009, %v1005
        %v1082 = vpack.c.b16 %v1010, %v1006
        %v1083 = vpack.c.b16 %v1015, %v1011
        %v1084 = vpack.c.b16 %v1016, %v1012
        %v1085 = vpack.c.b16 %v1017, %v1013
        %v1086 = vpack.c.b16 %v1018, %v1014
        %v1087 = vpack.c.b16 %v1023, %v1019
        %v1088 = vpack.c.b16 %v1024, %v1020
        %v1089 = vpack.c.b16 %v1025, %v1021
        %v1090 = vpack.c.b16 %v1026, %v1022
        %1155 = vmatpush.bf16.msra.mxu0 %v1055
        %1156 = vmatpush.bf16.msra.mxu0 %v1051
        %1157 = vmatpush.bf16.msra.mxu0 %v1047
        %1158 = vmatpush.bf16.msra.mxu0 %v1043
        %1159 = vmatpush.bf16.msra.mxu0 %v1039
        %1160 = vmatpush.bf16.msra.mxu0 %v1035
        %1161 = vmatpush.bf16.msra.mxu0 %v1031
        %1162 = vmatpush.bf16.msra.mxu0 %v1027
        %1163 = vmatmul.bf16.gmra.mxu0 %v259
        %v1164 = vpop.f32.mrf.mxu0
        %v1165 = vadd.f32 %v754, %v1164
        %v1166 = vpop.f32.mrf.mxu0
        %1167 = vdwg.mxu0
        %1168 = vmatpush.bf16.msra.mxu0 %v1087
        %1169 = vmatpush.bf16.msra.mxu0 %v1083
        %1170 = vmatpush.bf16.msra.mxu0 %v1079
        %1171 = vmatpush.bf16.msra.mxu0 %v1075
        %1172 = vmatpush.bf16.msra.mxu0 %v1071
        %1173 = vmatpush.bf16.msra.mxu0 %v1067
        %1174 = vmatpush.bf16.msra.mxu0 %v1063
        %1175 = vmatpush.bf16.msra.mxu0 %v1059
        %1176 = vmatmul.bf16.gmra.mxu0 %v260
        %v1177 = vpop.f32.mrf.mxu0
        %v1178 = vadd.f32 %v1165, %v1177
        %v1179 = vpop.f32.mrf.mxu0
        %1180 = vdwg.mxu0
        %1181 = vmatpush.bf16.msra.mxu0 %v1056
        %1182 = vmatpush.bf16.msra.mxu0 %v1052
        %1183 = vmatpush.bf16.msra.mxu0 %v1048
        %1184 = vmatpush.bf16.msra.mxu0 %v1044
        %1185 = vmatpush.bf16.msra.mxu0 %v1040
        %1186 = vmatpush.bf16.msra.mxu0 %v1036
        %1187 = vmatpush.bf16.msra.mxu0 %v1032
        %1188 = vmatpush.bf16.msra.mxu0 %v1028
        %1189 = vmatmul.bf16.gmra.mxu0 %v259
        %v1190 = vpop.f32.mrf.mxu0
        %v1191 = vadd.f32 %v780, %v1190
        %v1192 = vpop.f32.mrf.mxu0
        %1193 = vdwg.mxu0
        %1194 = vmatpush.bf16.msra.mxu0 %v1088
        %1195 = vmatpush.bf16.msra.mxu0 %v1084
        %1196 = vmatpush.bf16.msra.mxu0 %v1080
        %1197 = vmatpush.bf16.msra.mxu0 %v1076
        %1198 = vmatpush.bf16.msra.mxu0 %v1072
        %1199 = vmatpush.bf16.msra.mxu0 %v1068
        %1200 = vmatpush.bf16.msra.mxu0 %v1064
        %1201 = vmatpush.bf16.msra.mxu0 %v1060
        %1202 = vmatmul.bf16.gmra.mxu0 %v260
        %v1203 = vpop.f32.mrf.mxu0
        %v1204 = vadd.f32 %v1191, %v1203
        %v1205 = vpop.f32.mrf.mxu0
        %1206 = vdwg.mxu0
        %1207 = vmatpush.bf16.msra.mxu0 %v1057
        %1208 = vmatpush.bf16.msra.mxu0 %v1053
        %1209 = vmatpush.bf16.msra.mxu0 %v1049
        %1210 = vmatpush.bf16.msra.mxu0 %v1045
        %1211 = vmatpush.bf16.msra.mxu0 %v1041
        %1212 = vmatpush.bf16.msra.mxu0 %v1037
        %1213 = vmatpush.bf16.msra.mxu0 %v1033
        %1214 = vmatpush.bf16.msra.mxu0 %v1029
        %1215 = vmatmul.bf16.gmra.mxu0 %v259
        %v1216 = vpop.f32.mrf.mxu0
        %v1217 = vadd.f32 %v806, %v1216
        %v1218 = vpop.f32.mrf.mxu0
        %1219 = vdwg.mxu0
        %1220 = vmatpush.bf16.msra.mxu0 %v1089
        %1221 = vmatpush.bf16.msra.mxu0 %v1085
        %1222 = vmatpush.bf16.msra.mxu0 %v1081
        %1223 = vmatpush.bf16.msra.mxu0 %v1077
        %1224 = vmatpush.bf16.msra.mxu0 %v1073
        %1225 = vmatpush.bf16.msra.mxu0 %v1069
        %1226 = vmatpush.bf16.msra.mxu0 %v1065
        %1227 = vmatpush.bf16.msra.mxu0 %v1061
        %1228 = vmatmul.bf16.gmra.mxu0 %v260
        %v1229 = vpop.f32.mrf.mxu0
        %v1230 = vadd.f32 %v1217, %v1229
        %v1231 = vpop.f32.mrf.mxu0
        %1232 = vdwg.mxu0
        %1233 = vmatpush.bf16.msra.mxu0 %v1058
        %1234 = vmatpush.bf16.msra.mxu0 %v1054
        %1235 = vmatpush.bf16.msra.mxu0 %v1050
        %1236 = vmatpush.bf16.msra.mxu0 %v1046
        %1237 = vmatpush.bf16.msra.mxu0 %v1042
        %1238 = vmatpush.bf16.msra.mxu0 %v1038
        %1239 = vmatpush.bf16.msra.mxu0 %v1034
        %1240 = vmatpush.bf16.msra.mxu0 %v1030
        %1241 = vmatmul.bf16.gmra.mxu0 %v259
        %v1242 = vpop.f32.mrf.mxu0
        %v1243 = vadd.f32 %v832, %v1242
        %v1244 = vpop.f32.mrf.mxu0
        %1245 = vdwg.mxu0
        %1246 = vmatpush.bf16.msra.mxu0 %v1090
        %1247 = vmatpush.bf16.msra.mxu0 %v1086
        %1248 = vmatpush.bf16.msra.mxu0 %v1082
        %1249 = vmatpush.bf16.msra.mxu0 %v1078
        %1250 = vmatpush.bf16.msra.mxu0 %v1074
        %1251 = vmatpush.bf16.msra.mxu0 %v1070
        %1252 = vmatpush.bf16.msra.mxu0 %v1066
        %1253 = vmatpush.bf16.msra.mxu0 %v1062
        %1254 = vmatmul.bf16.gmra.mxu0 %v260
        %v1255 = vpop.f32.mrf.mxu0
        %v1256 = vadd.f32 %v1243, %v1255
        %v1257 = vpop.f32.mrf.mxu0
        %1258 = vdwg.mxu0
        %v1259 = vmul.f32 %v1178, %v1178
        %v1260 = vmul.f32 %v1204, %v1204
        %v1261 = vmul.f32 %v1230, %v1230
        %v1262 = vmul.f32 %v1256, %v1256
        %v1263 = vpack.c.bf16 %v1259, %v1259
        %v1264 = vpack.c.bf16 %v1260, %v1260
        %v1265 = vpack.c.bf16 %v1261, %v1261
        %v1266 = vpack.c.bf16 %v1262, %v1262
        %v1267 = vld [vmem:[%s3] sm:$0xf]
        %v1268 = vld [vmem:[%s3 + $0x4] sm:$0xf]
        %v1269 = vld [vmem:[%s3 + $0x8] sm:$0xf]
        %v1270 = vld [vmem:[%s3 + $0xc] sm:$0xf]
        %v1271 = vld [vmem:[%s3 + $0x10] sm:$0xf]
        %v1272 = vld [vmem:[%s3 + $0x14] sm:$0xf]
        %v1273 = vld [vmem:[%s3 + $0x18] sm:$0xf]
        %v1274 = vld [vmem:[%s3 + $0x1c] sm:$0xf]
        %v1275 = vld [vmem:[%s3 + $0x20] sm:$0xf]
        %v1276 = vld [vmem:[%s3 + $0x24] sm:$0xf]
        %v1277 = vld [vmem:[%s3 + $0x28] sm:$0xf]
        %v1278 = vld [vmem:[%s3 + $0x2c] sm:$0xf]
        %v1279 = vld [vmem:[%s3 + $0x30] sm:$0xf]
        %v1280 = vld [vmem:[%s3 + $0x34] sm:$0xf]
        %v1281 = vld [vmem:[%s3 + $0x38] sm:$0xf]
        %v1282 = vld [vmem:[%s3 + $0x3c] sm:$0xf]
        %v1283 = vld [vmem:[%s3 + $0x40] sm:$0xf]
        %v1284 = vld [vmem:[%s3 + $0x44] sm:$0xf]
        %v1285 = vld [vmem:[%s3 + $0x48] sm:$0xf]
        %v1286 = vld [vmem:[%s3 + $0x4c] sm:$0xf]
        %v1287 = vld [vmem:[%s3 + $0x50] sm:$0xf]
        %v1288 = vld [vmem:[%s3 + $0x54] sm:$0xf]
        %v1289 = vld [vmem:[%s3 + $0x58] sm:$0xf]
        %v1290 = vld [vmem:[%s3 + $0x5c] sm:$0xf]
        %v1291 = vld [vmem:[%s3 + $0x60] sm:$0xf]
        %v1292 = vld [vmem:[%s3 + $0x64] sm:$0xf]
        %v1293 = vld [vmem:[%s3 + $0x68] sm:$0xf]
        %v1294 = vld [vmem:[%s3 + $0x6c] sm:$0xf]
        %v1295 = vld [vmem:[%s3 + $0x70] sm:$0xf]
        %v1296 = vld [vmem:[%s3 + $0x74] sm:$0xf]
        %v1297 = vld [vmem:[%s3 + $0x78] sm:$0xf]
        %v1298 = vld [vmem:[%s3 + $0x7c] sm:$0xf]
        %v1299 = vld [vmem:[%s3 + $0x80] sm:$0xf]
        %v1300 = vld [vmem:[%s3 + $0x84] sm:$0xf]
        %v1301 = vld [vmem:[%s3 + $0x88] sm:$0xf]
        %v1302 = vld [vmem:[%s3 + $0x8c] sm:$0xf]
        %v1303 = vld [vmem:[%s3 + $0x90] sm:$0xf]
        %v1304 = vld [vmem:[%s3 + $0x94] sm:$0xf]
        %v1305 = vld [vmem:[%s3 + $0x98] sm:$0xf]
        %v1306 = vld [vmem:[%s3 + $0x9c] sm:$0xf]
        %v1307 = vld [vmem:[%s3 + $0xa0] sm:$0xf]
        %v1308 = vld [vmem:[%s3 + $0xa4] sm:$0xf]
        %v1309 = vld [vmem:[%s3 + $0xa8] sm:$0xf]
        %v1310 = vld [vmem:[%s3 + $0xac] sm:$0xf]
        %v1311 = vld [vmem:[%s3 + $0xb0] sm:$0xf]
        %v1312 = vld [vmem:[%s3 + $0xb4] sm:$0xf]
        %v1313 = vld [vmem:[%s3 + $0xb8] sm:$0xf]
        %v1314 = vld [vmem:[%s3 + $0xbc] sm:$0xf]
        %v1315 = vld [vmem:[%s3 + $0xc0] sm:$0xf]
        %v1316 = vld [vmem:[%s3 + $0xc4] sm:$0xf]
        %v1317 = vld [vmem:[%s3 + $0xc8] sm:$0xf]
        %v1318 = vld [vmem:[%s3 + $0xcc] sm:$0xf]
        %v1319 = vld [vmem:[%s3 + $0xd0] sm:$0xf]
        %v1320 = vld [vmem:[%s3 + $0xd4] sm:$0xf]
        %v1321 = vld [vmem:[%s3 + $0xd8] sm:$0xf]
        %v1322 = vld [vmem:[%s3 + $0xdc] sm:$0xf]
        %v1323 = vld [vmem:[%s3 + $0xe0] sm:$0xf]
        %v1324 = vld [vmem:[%s3 + $0xe4] sm:$0xf]
        %v1325 = vld [vmem:[%s3 + $0xe8] sm:$0xf]
        %v1326 = vld [vmem:[%s3 + $0xec] sm:$0xf]
        %v1327 = vld [vmem:[%s3 + $0xf0] sm:$0xf]
        %v1328 = vld [vmem:[%s3 + $0xf4] sm:$0xf]
        %v1329 = vld [vmem:[%s3 + $0xf8] sm:$0xf]
        %v1330 = vld [vmem:[%s3 + $0xfc] sm:$0xf]
        %v1395 = vunpack.c.l.b16 %v1267
        %v1396 = vunpack.c.l.b16 %v1268
        %v1397 = vunpack.c.l.b16 %v1269
        %v1398 = vunpack.c.l.b16 %v1270
        %v1399 = vunpack.c.l.b16 %v1271
        %v1400 = vunpack.c.l.b16 %v1272
        %v1401 = vunpack.c.l.b16 %v1273
        %v1402 = vunpack.c.l.b16 %v1274
        %v1403 = vunpack.c.l.b16 %v1275
        %v1404 = vunpack.c.l.b16 %v1276
        %v1405 = vunpack.c.l.b16 %v1277
        %v1406 = vunpack.c.l.b16 %v1278
        %v1407 = vunpack.c.l.b16 %v1279
        %v1408 = vunpack.c.l.b16 %v1280
        %v1409 = vunpack.c.l.b16 %v1281
        %v1410 = vunpack.c.l.b16 %v1282
        %v1411 = vunpack.c.l.b16 %v1283
        %v1412 = vunpack.c.l.b16 %v1284
        %v1413 = vunpack.c.l.b16 %v1285
        %v1414 = vunpack.c.l.b16 %v1286
        %v1415 = vunpack.c.l.b16 %v1287
        %v1416 = vunpack.c.l.b16 %v1288
        %v1417 = vunpack.c.l.b16 %v1289
        %v1418 = vunpack.c.l.b16 %v1290
        %v1419 = vunpack.c.l.b16 %v1291
        %v1420 = vunpack.c.l.b16 %v1292
        %v1421 = vunpack.c.l.b16 %v1293
        %v1422 = vunpack.c.l.b16 %v1294
        %v1423 = vunpack.c.l.b16 %v1295
        %v1424 = vunpack.c.l.b16 %v1296
        %v1425 = vunpack.c.l.b16 %v1297
        %v1426 = vunpack.c.l.b16 %v1298
        %v1427 = vunpack.c.l.b16 %v1299
        %v1428 = vunpack.c.l.b16 %v1300
        %v1429 = vunpack.c.l.b16 %v1301
        %v1430 = vunpack.c.l.b16 %v1302
        %v1431 = vunpack.c.l.b16 %v1303
        %v1432 = vunpack.c.l.b16 %v1304
        %v1433 = vunpack.c.l.b16 %v1305
        %v1434 = vunpack.c.l.b16 %v1306
        %v1435 = vunpack.c.l.b16 %v1307
        %v1436 = vunpack.c.l.b16 %v1308
        %v1437 = vunpack.c.l.b16 %v1309
        %v1438 = vunpack.c.l.b16 %v1310
        %v1439 = vunpack.c.l.b16 %v1311
        %v1440 = vunpack.c.l.b16 %v1312
        %v1441 = vunpack.c.l.b16 %v1313
        %v1442 = vunpack.c.l.b16 %v1314
        %v1443 = vunpack.c.l.b16 %v1315
        %v1444 = vunpack.c.l.b16 %v1316
        %v1445 = vunpack.c.l.b16 %v1317
        %v1446 = vunpack.c.l.b16 %v1318
        %v1447 = vunpack.c.l.b16 %v1319
        %v1448 = vunpack.c.l.b16 %v1320
        %v1449 = vunpack.c.l.b16 %v1321
        %v1450 = vunpack.c.l.b16 %v1322
        %v1451 = vunpack.c.l.b16 %v1323
        %v1452 = vunpack.c.l.b16 %v1324
        %v1453 = vunpack.c.l.b16 %v1325
        %v1454 = vunpack.c.l.b16 %v1326
        %v1455 = vunpack.c.l.b16 %v1327
        %v1456 = vunpack.c.l.b16 %v1328
        %v1457 = vunpack.c.l.b16 %v1329
        %v1458 = vunpack.c.l.b16 %v1330
        %v1459 = vpack.c.b16 %v1396, %v1395
        %v1460 = vpack.c.b16 %v1398, %v1397
        %v1461 = vpack.c.b16 %v1400, %v1399
        %v1462 = vpack.c.b16 %v1402, %v1401
        %v1463 = vpack.c.b16 %v1404, %v1403
        %v1464 = vpack.c.b16 %v1406, %v1405
        %v1465 = vpack.c.b16 %v1408, %v1407
        %v1466 = vpack.c.b16 %v1410, %v1409
        %v1467 = vpack.c.b16 %v1412, %v1411
        %v1468 = vpack.c.b16 %v1414, %v1413
        %v1469 = vpack.c.b16 %v1416, %v1415
        %v1470 = vpack.c.b16 %v1418, %v1417
        %v1471 = vpack.c.b16 %v1420, %v1419
        %v1472 = vpack.c.b16 %v1422, %v1421
        %v1473 = vpack.c.b16 %v1424, %v1423
        %v1474 = vpack.c.b16 %v1426, %v1425
        %v1475 = vpack.c.b16 %v1428, %v1427
        %v1476 = vpack.c.b16 %v1430, %v1429
        %v1477 = vpack.c.b16 %v1432, %v1431
        %v1478 = vpack.c.b16 %v1434, %v1433
        %v1479 = vpack.c.b16 %v1436, %v1435
        %v1480 = vpack.c.b16 %v1438, %v1437
        %v1481 = vpack.c.b16 %v1440, %v1439
        %v1482 = vpack.c.b16 %v1442, %v1441
        %v1483 = vpack.c.b16 %v1444, %v1443
        %v1484 = vpack.c.b16 %v1446, %v1445
        %v1485 = vpack.c.b16 %v1448, %v1447
        %v1486 = vpack.c.b16 %v1450, %v1449
        %v1487 = vpack.c.b16 %v1452, %v1451
        %v1488 = vpack.c.b16 %v1454, %v1453
        %v1489 = vpack.c.b16 %v1456, %v1455
        %v1490 = vpack.c.b16 %v1458, %v1457
        %1523 = vmatpush.bf16.msra.mxu0 %v1466
        %1524 = vmatpush.bf16.msra.mxu0 %v1465
        %1525 = vmatpush.bf16.msra.mxu0 %v1464
        %1526 = vmatpush.bf16.msra.mxu0 %v1463
        %1527 = vmatpush.bf16.msra.mxu0 %v1462
        %1528 = vmatpush.bf16.msra.mxu0 %v1461
        %1529 = vmatpush.bf16.msra.mxu0 %v1460
        %1530 = vmatpush.bf16.msra.mxu0 %v1459
        %1531 = vmatmul.bf16.gmra.mxu0 %v1263
        %v1532 = vpop.f32.mrf.mxu0
        %v1533 = vadd.f32 1e-06, %v1532
        %v1534 = vpop.f32.mrf.mxu0
        %1535 = vdwg.mxu0
        %1536 = vmatpush.bf16.msra.mxu0 %v1474
        %1537 = vmatpush.bf16.msra.mxu0 %v1473
        %1538 = vmatpush.bf16.msra.mxu0 %v1472
        %1539 = vmatpush.bf16.msra.mxu0 %v1471
        %1540 = vmatpush.bf16.msra.mxu0 %v1470
        %1541 = vmatpush.bf16.msra.mxu0 %v1469
        %1542 = vmatpush.bf16.msra.mxu0 %v1468
        %1543 = vmatpush.bf16.msra.mxu0 %v1467
        %1544 = vmatmul.bf16.gmra.mxu0 %v1264
        %v1545 = vpop.f32.mrf.mxu0
        %v1546 = vadd.f32 %v1533, %v1545
        %v1547 = vpop.f32.mrf.mxu0
        %1548 = vdwg.mxu0
        %1549 = vmatpush.bf16.msra.mxu0 %v1482
        %1550 = vmatpush.bf16.msra.mxu0 %v1481
        %1551 = vmatpush.bf16.msra.mxu0 %v1480
        %1552 = vmatpush.bf16.msra.mxu0 %v1479
        %1553 = vmatpush.bf16.msra.mxu0 %v1478
        %1554 = vmatpush.bf16.msra.mxu0 %v1477
        %1555 = vmatpush.bf16.msra.mxu0 %v1476
        %1556 = vmatpush.bf16.msra.mxu0 %v1475
        %1557 = vmatmul.bf16.gmra.mxu0 %v1265
        %v1558 = vpop.f32.mrf.mxu0
        %v1559 = vadd.f32 %v1546, %v1558
        %v1560 = vpop.f32.mrf.mxu0
        %1561 = vdwg.mxu0
        %1562 = vmatpush.bf16.msra.mxu0 %v1490
        %1563 = vmatpush.bf16.msra.mxu0 %v1489
        %1564 = vmatpush.bf16.msra.mxu0 %v1488
        %1565 = vmatpush.bf16.msra.mxu0 %v1487
        %1566 = vmatpush.bf16.msra.mxu0 %v1486
        %1567 = vmatpush.bf16.msra.mxu0 %v1485
        %1568 = vmatpush.bf16.msra.mxu0 %v1484
        %1569 = vmatpush.bf16.msra.mxu0 %v1483
        %1570 = vmatmul.bf16.gmra.mxu0 %v1266
        %v1571 = vpop.f32.mrf.mxu0
        %v1572 = vadd.f32 %v1559, %v1571
        %v1573 = vpop.f32.mrf.mxu0
        %1574 = vdwg.mxu0
        %v1575 = vlog2.pop %v1572
        %v1576 = vmul.f32 %v1575, 0.6931472
        %v1577 = vld [vmem:[%s4] sm:$0xff]
        %v1578 = vld [vmem:[%s4 + $0x8] sm:$0xff]
        %v1579 = vld [vmem:[%s4 + $0x10] sm:$0xff]
        %v1580 = vld [vmem:[%s4 + $0x18] sm:$0xff]
        %v1581 = vld [vmem:[%s4 + $0x20] sm:$0xff]
        %v1582 = vld [vmem:[%s4 + $0x28] sm:$0xff]
        %v1583 = vld [vmem:[%s4 + $0x30] sm:$0xff]
        %v1584 = vld [vmem:[%s4 + $0x38] sm:$0xff]
        %v1585 = vld [vmem:[%s4 + $0x40] sm:$0xff]
        %v1586 = vld [vmem:[%s4 + $0x48] sm:$0xff]
        %vm1587 = vcmask 654336
        %v1589 = vsel %vm1587, %v1576, 0
        %1591 = vmatpush.msra.mxu0 0.0
        %1592 = vmatpush.msra.mxu0 0.0
        %1593 = vmatpush.msra.mxu0 0.0
        %1594 = vmatpush.msra.mxu0 0.0
        %1595 = vmatpush.msra.mxu0 0.0
        %1596 = vmatpush.msra.mxu0 0.0
        %1597 = vmatpush.msra.mxu0 %v1586
        %1598 = vmatpush.msra.mxu0 %v1585
        %1599 = vmatpush.msra.mxu0 %v1584
        %1600 = vmatpush.msra.mxu0 %v1583
        %1601 = vmatpush.msra.mxu0 %v1582
        %1602 = vmatpush.msra.mxu0 %v1581
        %1603 = vmatpush.msra.mxu0 %v1580
        %1604 = vmatpush.msra.mxu0 %v1579
        %1605 = vmatpush.msra.mxu0 %v1578
        %1606 = vmatpush.msra.mxu0 %v1577
        %1607 = vmatmul.f32.gmra.mxu0 %v1589
        %v1608 = vpop.f32.mrf.mxu0
        %v1609 = vadd.f32 0.0, %v1608
        %1610 = vdwg.mxu0
        %v1611 = vlaneseq
        %v1612 = vshrl.u32 %v1611, 7
        %vm1613 = vcmp.lt.s32.totalorder %v1612, 0
        %v1614 = vsub.s32 0, %v1612
        %v1615 = vsel %vm1613, %v1614, %v1612
        %v1616 = vshrl.u32 %v1615, 3
        %v1617 = vand.u32 %v1615, 7
        %v1618 = vsub.s32 0, %v1617
        %v1619 = vsel %vm1613, %v1618, %v1617
        %vm1620 = vcmp.ne.s32.totalorder %v1619, 0
        %vm1621 = vcmp.lt.s32.totalorder %v1619, 0
        %vm1622 = vmand %vm1621, %vm1620
        %v1623 = vadd.s32 %v1619, 8
        %v1624 = vsel %vm1622, %v1623, %v1619
        %vm1625 = vcmp.eq.s32.totalorder %v1624, 7
        %v1626 = vrot.slane %v1609, 1
        %v1627 = vsel %vm1625, 0.0, %v1626
        %vm1628 = vcmp.eq.s32.totalorder %v1624, 0
        %v1629 = vrot.slane %v1609, 7
        %v1630 = vsel %vm1628, 0.0, %v1629
        %v1631 = vsub.f32 %v1627, %v1630
        %v1632 = vmul.f32 %v1631, 0.5
        %v1633 = vrot.slane %v1632, 1
        %v1634 = vsel %vm1625, 0.0, %v1633
        %v1635 = vrot.slane %v1632, 7
        %v1636 = vsel %vm1628, 0.0, %v1635
        %v1637 = vsub.f32 %v1634, %v1636
        %v1638 = vmul.f32 %v1637, 0.5
        %1640 = vrot.lane.b32.xlu0 %v1632, 13
        %v1641 = vpop.permute.xlu0 %1640
        %1644 = vrot.lane.b32.xlu0 %v1638, 26
        %v1645 = vpop.permute.xlu0 %1644
        %vm1647 = vcmask 105472
        %v1648 = vsel %vm1647, %v1609, %v1641
        %vm1649 = vcmask 211968
        %v1650 = vsel %vm1649, %v1648, %v1645
        %vm1651 = vcmask 318464
        %v1652 = vsel %vm1651, %v1650, 0.0
        %1653 = vst [vmem:[%s251] sm:$0xff] %v1652
        %s1654 = sand.u32 %s139, 1
        %s1655 = scalar_lea.sflag [#allocation4], %s1654
        %s1656 = sand.u32 %s139, 1
        %s1657 = smul.addr %s1656, 8
        %s1658 = scalar_lea.vmem [#allocation7], %s1657
        // Predicated region
        $region49: #{tpu_custom_call.1} parent=39 // pred_check
          %p1659 = pneg %p149
        $region50: #{tpu_custom_call.1} parent=39 // pred_check_branch
          %1661 = sbr.rel (%p1659) target = $region52
        $region51: #{tpu_custom_call.1} parent=39 // pred_region
          %1663 = vsyncadd %s1655, 0
          %s1664 = smul.addr %s21, 8
          %s1665 = scalar_lea.hbm %s5, %s1664
          %s1667 = sshll.u32 %s1658, 4
          %s1668 = int_to_ptr.vmem [resolvable:$true] %s1667
          %s1669 = sshll.u32 %s1665, 4
          %s1670 = int_to_ptr.hbm [resolvable:$true] %s1669
          %1672 = dma.vmem_to_hbm [thread:$0]  %s1668, 128, %s1670, %s1655
        $region52: #{tpu_custom_call.1} parent=39 // pred_fallthru
          _
      $region40: #{tpu_custom_call.1} parent=5 // pred_fallthru
        _
      %p1673 = scmp.le.s32.totalorder 2, %s16
      // Predicated region
      $region53: #{tpu_custom_call.1} parent=5 // pred_check
        %p1674 = pneg %p1673
      $region54: #{tpu_custom_call.1} parent=5 // pred_check_branch
        %1676 = sbr.rel (%p1674) target = $region56
      $region55: #{tpu_custom_call.1} parent=5 // pred_region
        %s1677 = ssub.s32 %s16, 2
        // Predicated region
        $region57: #{tpu_custom_call.1} parent=55 // pred_check
          %p1678 = pneg %p155
        $region58: #{tpu_custom_call.1} parent=55 // pred_check_branch
          %1680 = sbr.rel (%p1678) target = $region60
        $region59: #{tpu_custom_call.1} parent=55 // pred_region
          %s1681 = sand.u32 %s140, 1
          %s1682 = scalar_lea.sflag [#allocation4], %s1681
          %s1683 = sand.u32 %s140, 1
          %s1684 = smul.addr %s1683, 8
          %s1685 = scalar_lea.vmem [#allocation7], %s1684
          %1687 = dma.done %s1682, 128
        $region60: #{tpu_custom_call.1} parent=55 // pred_fallthru
          _
      $region56: #{tpu_custom_call.1} parent=5 // pred_fallthru
        _
    $region6: #{tpu_custom_call.1} parent=1 // loop_footer
      %s20 = sadd.s32 1, %s16
    $region7: #{tpu_custom_call.1} parent=1 // loop_footer_branch
      %15 = sbr.rel target = $region3
    $region8: #{tpu_custom_call.1} parent=1 // loop_exit
      _
    %1688 = vsyncpa [#allocation3], 1
    %s1689 = scalar_lea.sflag [#allocation3], 1
    %1690 = vsyncpa %s1689, 1
    %1691 = vsyncpa [#allocation6], 1
    %1692 = vsyncpa [#allocation4], 1
    %s1693 = scalar_lea.sflag [#allocation4], 1
    %1694 = vsyncpa %s1693, 1

</llo_original>
